<compile_context>
chip_gen: v6e
topology: v6e:2x2x1
jax: 0.10.0
libtpu: 0.0.40
codegen_flags: <defaults>
</compile_context>

<pallas_src>
import jax
import jax.numpy as jnp
from jax.experimental import pallas as pl
from jax.experimental.pallas import tpu as pltpu


# ----------------------------------------------------------------------------
# Pallas kernel: fused bag-pooling bf16 matmuls + cross-multiplied cosine cmp.
# Grid: (B_pad // TILE_B, V_pad // TILE_V); V is the reduction ("arbitrary").
# ----------------------------------------------------------------------------
def _pairwise_kernel(w_ref, hi_ref, lo_ref, out_ref, acc_ref):
    # w_ref:   (3, TILE_B, TILE_V) bf16  stacked [user, pos, neg] bag counts
    # hi_ref:  (TILE_V, D_pad)     bf16  high bf16 plane of the f32 table
    # lo_ref:  (TILE_V, D_pad)     bf16  low  bf16 plane (f32 residual)
    # out_ref: (TILE_B, 128)       f32   lane-dense result slab
    # acc_ref: (3*TILE_B, D_pad)   f32   matmul accumulator scratch
    k = pl.program_id(1)
    tb = w_ref.shape[1]

    @pl.when(k == 0)
    def _init():
        acc_ref[...] = jnp.zeros_like(acc_ref)

    # Fused MXU matmuls: both operands native bf16, f32 accumulation.
    # (3, tb, tv) -> (3*tb, tv) is a free relayout (tb is a multiple of 16).
    w = w_ref[...].reshape(3 * tb, w_ref.shape[2])
    acc_ref[...] += jnp.dot(w, hi_ref[...], preferred_element_type=jnp.float32)
    acc_ref[...] += jnp.dot(w, lo_ref[...], preferred_element_type=jnp.float32)

    @pl.when(k == pl.num_programs(1) - 1)
    def _finalize():
        x = acc_ref[...]                       # (3*tb, D_pad) f32 sum-pooled
        u = x[0 * tb:1 * tb, :]
        p = x[1 * tb:2 * tb, :]
        n = x[2 * tb:3 * tb, :]

        eps = jnp.float32(1e-8)
        dot_up = jnp.sum(u * p, axis=-1, keepdims=True)                 # (tb, 1)
        dot_un = jnp.sum(u * n, axis=-1, keepdims=True)
        norm_p = jnp.maximum(jnp.sqrt(jnp.sum(p * p, axis=-1, keepdims=True)), eps)
        norm_n = jnp.maximum(jnp.sqrt(jnp.sum(n * n, axis=-1, keepdims=True)), eps)

        # cos(u,p) > cos(u,n)  <=>  dot_up * norm_n > dot_un * norm_p
        # (clamped norms > 0; user norm and the bag-count scale factors cancel).
        res = (dot_up * norm_n > dot_un * norm_p).astype(jnp.float32)
        out_ref[...] = jnp.broadcast_to(res, out_ref.shape)             # lane-dense


# ----------------------------------------------------------------------------
# Tile / VMEM budgeting (per TPU generation).
# ----------------------------------------------------------------------------
def _round_up(x, m):
    return ((x + m - 1) // m) * m


def _vmem_budget_bytes():
    try:
        cap = pltpu.get_tpu_info().vmem_capacity_bytes
    except Exception:  # conservative fallback (v7x physical VMEM)
        cap = 64 * 1024 * 1024
    return int(cap * 0.6)   # leave headroom for compiler scratch / metadata


def _vmem_bytes(tile_b, tile_v, d_pad):
    w_bytes = 2 * 3 * tile_b * tile_v * 2       # double-buffered bf16 W stream
    tab_bytes = 2 * 2 * tile_v * d_pad * 2      # hi+lo bf16 planes, double-buffered
    acc_bytes = 3 * tile_b * d_pad * 4          # f32 accumulator scratch
    out_bytes = 2 * tile_b * 128 * 4            # lane-dense output slab
    return w_bytes + tab_bytes + acc_bytes + out_bytes


def _select_tiles(b_pad, v_pad, d_pad, budget):
    # tile_b >= 128 keeps M = 3*tile_b >= 384 (full 256-row MXU on v6e/v7x).
    tb_cands = [c for c in (256, 128) if c <= b_pad and b_pad % c == 0] or [b_pad]
    # Prefer table residency: tile_v == V_pad -> constant table block index ->
    # the (hi, lo) planes are DMA'd from HBM exactly once.
    for tb in tb_cands:
        if _vmem_bytes(tb, v_pad, d_pad) <= budget:
            return tb, v_pad
    # Streaming fallback: keep tile_b as large as possible (fewer full-table
    # sweeps), then the largest reduction block that fits.
    for tb in tb_cands:
        for tv in (4096, 2048, 1024, 512, 256, 128):
            if tv < v_pad and v_pad % tv == 0 and _vmem_bytes(tb, tv, d_pad) <= budget:
                return tb, tv
    return tb_cands[-1], 128


def _pairwise_pallas(w, table_hi, table_lo, b_true):
    """w: (3, B_pad, V_pad) bf16; table_hi/lo: (V_pad, D_pad) bf16."""
    _, b_pad, v_pad = w.shape
    d_pad = table_hi.shape[1]

    budget = _vmem_budget_bytes()
    tile_b, tile_v = _select_tiles(b_pad, v_pad, d_pad, budget)
    grid = (b_pad // tile_b, v_pad // tile_v)

    out = pl.pallas_call(
        _pairwise_kernel,
        out_shape=jax.ShapeDtypeStruct((b_pad, 128), jnp.float32),
        grid_spec=pltpu.PrefetchScalarGridSpec(
            num_scalar_prefetch=0,
            grid=grid,
            in_specs=[
                pl.BlockSpec((3, tile_b, tile_v), lambda i, k: (0, i, k)),
                pl.BlockSpec((tile_v, d_pad), lambda i, k: (k, 0)),
                pl.BlockSpec((tile_v, d_pad), lambda i, k: (k, 0)),
            ],
            out_specs=pl.BlockSpec((tile_b, 128), lambda i, k: (i, 0)),
            scratch_shapes=[pltpu.VMEM((3 * tile_b, d_pad), jnp.float32)],
        ),
        compiler_params=pltpu.CompilerParams(
            dimension_semantics=("parallel", "arbitrary"),
            vmem_limit_bytes=budget,
        ),
    )(w, table_hi, table_lo)
    return out[:b_true, 0]


# ----------------------------------------------------------------------------
# Glue: ragged (indices, offsets) -> dense bag-count matrix.
# Matches torch.nn.EmbeddingBag accumulation: duplicate indices accumulate,
# empty bags pool to zero.  Assumes sorted offsets with offsets[0] == 0.
# ----------------------------------------------------------------------------
def _bag_counts(indices, offsets, num_bags, vocab_pad):
    n = indices.shape[0]
    pos = jnp.arange(n)
    seg = jnp.searchsorted(offsets, pos, side="right") - 1      # bag id per index
    return jnp.zeros((num_bags, vocab_pad), jnp.float32).at[seg, indices].add(1.0)


# ----------------------------------------------------------------------------
# Model wrapper mirroring CommunityGraphModelPairwise.forward
# ----------------------------------------------------------------------------
class CommunityGraphModelPairwise:
    def __init__(self, embedding_table):
        # embedding_table: (V, D) — the node2vec EmbeddingBag weights (f32).
        table = embedding_table.astype(jnp.float32)
        self.vocab, self.dim = table.shape
        self.v_pad = _round_up(self.vocab, 128)
        self.d_pad = _round_up(self.dim, 128)
        table_pad = (
            jnp.zeros((self.v_pad, self.d_pad), jnp.float32)
            .at[: self.vocab, : self.dim]
            .set(table)
        )
        # hi/lo bf16 split: W @ table_f32 == W @ hi + W @ lo to ~f32 accuracy,
        # so both MXU operands stay native bf16 (no slow f32 MXU path, no
        # in-kernel W upcast), while results track the PyTorch f32 math.
        hi = table_pad.astype(jnp.bfloat16)
        lo = (table_pad - hi.astype(jnp.float32)).astype(jnp.bfloat16)
        self.table_hi = hi
        self.table_lo = lo

    def forward(self, user_emb, user_emb_offsets, pos_section, neg_section):
        pos_idx, pos_off = pos_section
        neg_idx, neg_off = neg_section
        b = user_emb_offsets.shape[0]
        # Pad B to a multiple of 128 so M = 3*tile_b fills the MXU and the
        # in-kernel bf16 reshape stays a free relayout; padding rows are zero.
        b_pad = _round_up(max(b, 128), 128)

        wu = _bag_counts(user_emb, user_emb_offsets, b_pad, self.v_pad)
        wp = _bag_counts(pos_idx, pos_off, b_pad, self.v_pad)
        wn = _bag_counts(neg_idx, neg_off, b_pad, self.v_pad)

        # bf16 counts are exact integers up to 256 repeats of an index per bag;
        # halves the dominant W HBM stream vs f32 and keeps the MXU in bf16.
        # Mean (1/count) scaling is dropped: cosine is scale-invariant and the
        # count factors cancel identically in the pos-vs-neg comparison.
        w = jnp.stack([wu, wp, wn], axis=0).astype(jnp.bfloat16)   # (3, B_pad, V_pad)

        return _pairwise_pallas(w, self.table_hi, self.table_lo, b)


# ----------------------------------------------------------------------------
# Plain-JAX reference (faithful PyTorch math: mean pooling, eps-clamped cosine,
# strict >).  Returns the boolean output and the cosine margin so the test can
# tolerate rounding-path differences only at exact near-ties.
# ----------------------------------------------------------------------------
def _reference(table, user_emb, user_off, pos, neg):
    b = user_off.shape[0]

    def pool(idx, off):
        n = idx.shape[0]
        p = jnp.arange(n)
        seg = jnp.searchsorted(off, p, side="right") - 1
        summed = jnp.zeros((b, table.shape[1]), jnp.float32).at[seg].add(table[idx])
        counts = jnp.zeros((b,), jnp.float32).at[seg].add(1.0)
        return summed / jnp.maximum(counts, 1.0)[:, None]

    def cos(a, c):
        eps = 1e-8
        na = jnp.maximum(jnp.sqrt(jnp.sum(a * a, axis=-1)), eps)
        nc = jnp.maximum(jnp.sqrt(jnp.sum(c * c, axis=-1)), eps)
        return jnp.sum(a * c, axis=-1) / (na * nc)

    u = pool(user_emb, user_off)
    cos_p = cos(u, pool(*pos))
    cos_n = cos(u, pool(*neg))
    return (cos_p > cos_n).astype(jnp.float32), cos_p - cos_n


if __name__ == "__main__":
    key = jax.random.PRNGKey(0)
    k_tab, k_u, k_p, k_n = jax.random.split(key, 4)

    VOCAB = 64          # number of node2vec nodes
    DIM = 32            # node2vec_embedding_dim
    B = 8               # number of (user, pos, neg) pairs
    N_IDX = 24          # total flattened indices per ragged input (3 per bag)

    # Deterministic synthetic node2vec embedding table.
    table = jax.random.normal(k_tab, (VOCAB, DIM), dtype=jnp.float32)

    # Ragged index lists + offsets (bag b owns indices [offsets[b], offsets[b+1])).
    user_emb = jax.random.randint(k_u, (N_IDX,), 0, VOCAB)
    pos_idx = jax.random.randint(k_p, (N_IDX,), 0, VOCAB)
    neg_idx = jax.random.randint(k_n, (N_IDX,), 0, VOCAB)
    offsets = jnp.arange(B, dtype=jnp.int32) * (N_IDX // B)

    model = CommunityGraphModelPairwise(table)
    out = model.forward(user_emb, offsets, (pos_idx, offsets), (neg_idx, offsets))
    out = jax.block_until_ready(out)

    ref, margin = _reference(table, user_emb, offsets, (pos_idx, offsets),
                             (neg_idx, offsets))
    assert out.shape == (B,), out.shape
    # Require agreement everywhere except exact near-ties (|cos_p - cos_n| tiny),
    # where the cross-multiplied compare may legitimately round differently.
    decided = jnp.abs(margin) > 1e-5
    assert bool(jnp.all(jnp.where(decided, out == ref, True))), (out, ref, margin)

    print("KERNEL_OK")
</pallas_src>

<mosaic_0001>
module attributes {stable_mosaic.version = 11 : i64} {
  func.func @_pairwise_kernel(%arg0: i32, %arg1: i32, %arg2: memref<3x128x128xbf16, #tpu.memory_space<vmem>>, %arg3: memref<128x128xbf16, #tpu.memory_space<vmem>>, %arg4: memref<128x128xbf16, #tpu.memory_space<vmem>>, %arg5: memref<128x128xf32, #tpu.memory_space<vmem>>, %arg6: memref<384x128xf32, #tpu.memory_space<vmem>>) attributes {dimension_semantics = [#tpu.dimension_semantics<parallel>, #tpu.dimension_semantics<arbitrary>], iteration_bounds = array<i64: 1, 1>, scalar_prefetch = 0 : i64, scratch_operands = 1 : i64, tpu.core_type = #tpu.core_type<tc>, window_params = [{transform_indices = @transform_0, window_bounds = array<i64: 3, 128, 128>}, {transform_indices = @transform_1, window_bounds = array<i64: 128, 128>}, {transform_indices = @transform_2, window_bounds = array<i64: 128, 128>}, {transform_indices = @transform_3, window_bounds = array<i64: 128, 128>}]} {
    %c0_i32 = arith.constant 0 : i32
    %0 = arith.cmpi eq, %arg1, %c0_i32 : i32
    %1 = arith.extui %0 : i1 to i32
    %c0_i32_0 = arith.constant 0 : i32
    %2 = arith.cmpi ne, %1, %c0_i32_0 : i32
    scf.if %2 {
      %cst_18 = arith.constant 0.000000e+00 : f32
      %18 = vector.broadcast %cst_18 : f32 to vector<384x128xf32>
      %c0_19 = arith.constant 0 : index
      %c0_20 = arith.constant 0 : index
      %19 = vector.load %arg6[%c0_19, %c0_20] : memref<384x128xf32, #tpu.memory_space<vmem>>, vector<384x128xf32>
      tpu.vector_store %arg6[%c0_19, %c0_20], %18 {strides = array<i32>} : memref<384x128xf32, #tpu.memory_space<vmem>>, vector<384x128xf32>,
    } else {
    }
    %c0 = arith.constant 0 : index
    %c0_1 = arith.constant 0 : index
    %c0_2 = arith.constant 0 : index
    %3 = vector.load %arg2[%c0, %c0_1, %c0_2] : memref<3x128x128xbf16, #tpu.memory_space<vmem>>, vector<3x128x128xbf16>
    %4 = vector.shape_cast %3 : vector<3x128x128xbf16> to vector<384x128xbf16>
    %c0_3 = arith.constant 0 : index
    %c0_4 = arith.constant 0 : index
    %5 = vector.load %arg6[%c0_3, %c0_4] : memref<384x128xf32, #tpu.memory_space<vmem>>, vector<384x128xf32>
    %c0_5 = arith.constant 0 : index
    %c0_6 = arith.constant 0 : index
    %6 = vector.load %arg3[%c0_5, %c0_6] : memref<128x128xbf16, #tpu.memory_space<vmem>>, vector<128x128xbf16>
    %cst = arith.constant dense<0.000000e+00> : vector<384x128xf32>
    %7 = tpu.matmul %4, %6, %cst {dimension_numbers = #tpu.dot_dimension_numbers<[1], [0], [0], [1], [0, 0, 1, 1], [], []>} : vector<384x128xbf16>, vector<128x128xbf16>, vector<384x128xf32> -> vector<384x128xf32>
    %8 = arith.addf %5, %7 : vector<384x128xf32>
    %c0_7 = arith.constant 0 : index
    %c0_8 = arith.constant 0 : index
    %9 = vector.load %arg6[%c0_7, %c0_8] : memref<384x128xf32, #tpu.memory_space<vmem>>, vector<384x128xf32>
    tpu.vector_store %arg6[%c0_7, %c0_8], %8 {strides = array<i32>} : memref<384x128xf32, #tpu.memory_space<vmem>>, vector<384x128xf32>,
    %c0_9 = arith.constant 0 : index
    %c0_10 = arith.constant 0 : index
    %10 = vector.load %arg6[%c0_9, %c0_10] : memref<384x128xf32, #tpu.memory_space<vmem>>, vector<384x128xf32>
    %c0_11 = arith.constant 0 : index
    %c0_12 = arith.constant 0 : index
    %11 = vector.load %arg4[%c0_11, %c0_12] : memref<128x128xbf16, #tpu.memory_space<vmem>>, vector<128x128xbf16>
    %cst_13 = arith.constant dense<0.000000e+00> : vector<384x128xf32>
    %12 = tpu.matmul %4, %11, %cst_13 {dimension_numbers = #tpu.dot_dimension_numbers<[1], [0], [0], [1], [0, 0, 1, 1], [], []>} : vector<384x128xbf16>, vector<128x128xbf16>, vector<384x128xf32> -> vector<384x128xf32>
    %13 = arith.addf %10, %12 : vector<384x128xf32>
    %c0_14 = arith.constant 0 : index
    %c0_15 = arith.constant 0 : index
    %14 = vector.load %arg6[%c0_14, %c0_15] : memref<384x128xf32, #tpu.memory_space<vmem>>, vector<384x128xf32>
    tpu.vector_store %arg6[%c0_14, %c0_15], %13 {strides = array<i32>} : memref<384x128xf32, #tpu.memory_space<vmem>>, vector<384x128xf32>,
    %c0_i32_16 = arith.constant 0 : i32
    %15 = arith.cmpi eq, %arg1, %c0_i32_16 : i32
    %16 = arith.extui %15 : i1 to i32
    %c0_i32_17 = arith.constant 0 : i32
    %17 = arith.cmpi ne, %16, %c0_i32_17 : i32
    scf.if %17 {
      %c0_18 = arith.constant 0 : index
      %c0_19 = arith.constant 0 : index
      %18 = vector.load %arg6[%c0_18, %c0_19] : memref<384x128xf32, #tpu.memory_space<vmem>>, vector<384x128xf32>
      %19 = vector.extract_strided_slice %18 {offsets = [0, 0], sizes = [128, 128], strides = [1, 1]} : vector<384x128xf32> to vector<128x128xf32>
      %20 = vector.extract_strided_slice %18 {offsets = [128, 0], sizes = [128, 128], strides = [1, 1]} : vector<384x128xf32> to vector<128x128xf32>
      %21 = vector.extract_strided_slice %18 {offsets = [256, 0], sizes = [128, 128], strides = [1, 1]} : vector<384x128xf32> to vector<128x128xf32>
      %22 = arith.mulf %19, %20 : vector<128x128xf32>
      %cst_20 = arith.constant dense<0.000000e+00> : vector<128xf32>
      %23 = vector.multi_reduction <add>, %22, %cst_20 [1] : vector<128x128xf32> to vector<128xf32>
      %24 = vector.shape_cast %23 : vector<128xf32> to vector<128x1xf32>
      %25 = arith.mulf %19, %21 : vector<128x128xf32>
      %cst_21 = arith.constant dense<0.000000e+00> : vector<128xf32>
      %26 = vector.multi_reduction <add>, %25, %cst_21 [1] : vector<128x128xf32> to vector<128xf32>
      %27 = vector.shape_cast %26 : vector<128xf32> to vector<128x1xf32>
      %28 = arith.mulf %20, %20 : vector<128x128xf32>
      %cst_22 = arith.constant dense<0.000000e+00> : vector<128xf32>
      %29 = vector.multi_reduction <add>, %28, %cst_22 [1] : vector<128x128xf32> to vector<128xf32>
      %30 = vector.shape_cast %29 : vector<128xf32> to vector<128x1xf32>
      %31 = math.sqrt %30 : vector<128x1xf32>
      %cst_23 = arith.constant 9.99999993E-9 : f32
      %32 = vector.broadcast %cst_23 : f32 to vector<128x1xf32>
      %33 = arith.maximumf %31, %32 : vector<128x1xf32>
      %34 = arith.mulf %21, %21 : vector<128x128xf32>
      %cst_24 = arith.constant dense<0.000000e+00> : vector<128xf32>
      %35 = vector.multi_reduction <add>, %34, %cst_24 [1] : vector<128x128xf32> to vector<128xf32>
      %36 = vector.shape_cast %35 : vector<128xf32> to vector<128x1xf32>
      %37 = math.sqrt %36 : vector<128x1xf32>
      %cst_25 = arith.constant 9.99999993E-9 : f32
      %38 = vector.broadcast %cst_25 : f32 to vector<128x1xf32>
      %39 = arith.maximumf %37, %38 : vector<128x1xf32>
      %40 = arith.mulf %24, %39 : vector<128x1xf32>
      %41 = arith.mulf %27, %33 : vector<128x1xf32>
      %42 = arith.cmpf ogt, %40, %41 : vector<128x1xf32>
      %43 = arith.extui %42 : vector<128x1xi1> to vector<128x1xi32>
      %44 = arith.sitofp %43 : vector<128x1xi32> to vector<128x1xf32>
      %45 = vector.shape_cast %44 : vector<128x1xf32> to vector<128x1xf32>
      %46 = vector.broadcast %45 : vector<128x1xf32> to vector<128x128xf32>
      %c0_26 = arith.constant 0 : index
      %c0_27 = arith.constant 0 : index
      %47 = vector.load %arg5[%c0_26, %c0_27] : memref<128x128xf32, #tpu.memory_space<vmem>>, vector<128x128xf32>
      tpu.vector_store %arg5[%c0_26, %c0_27], %46 {strides = array<i32>} : memref<128x128xf32, #tpu.memory_space<vmem>>, vector<128x128xf32>,
    } else {
    }
    return
  }
  func.func @transform_0(%arg0: i32, %arg1: i32) -> (i32, i32, i32) {
    %c0_i32 = arith.constant 0 : i32
    %c0_i32_0 = arith.constant 0 : i32
    return %c0_i32, %arg0, %arg1 : i32, i32, i32
  }
  func.func @transform_1(%arg0: i32, %arg1: i32) -> (i32, i32) {
    %c0_i32 = arith.constant 0 : i32
    %c0_i32_0 = arith.constant 0 : i32
    return %arg1, %c0_i32 : i32, i32
  }
  func.func @transform_2(%arg0: i32, %arg1: i32) -> (i32, i32) {
    %c0_i32 = arith.constant 0 : i32
    %c0_i32_0 = arith.constant 0 : i32
    return %arg1, %c0_i32 : i32, i32
  }
  func.func @transform_3(%arg0: i32, %arg1: i32) -> (i32, i32) {
    %c0_i32 = arith.constant 0 : i32
    %c0_i32_0 = arith.constant 0 : i32
    return %arg0, %c0_i32 : i32, i32
  }
}

</mosaic_0001>

<llo_original>
// kernel: tpu_custom_call.1
$region0: #{tpu_custom_call.1}
  #allocation0 [shape = 'u32[]', space=smem, size = 0x4, offset = 0x4, fixed_abs, tag = 'smem constant byte address 0x4 - core index']
  #allocation1 [shape = 'u32[144,128]{1,0:T(1,128)}', space=vmem, size = 0x12000, scoped, tag = 'internal scratch']
  #allocation2 [shape = 'f32[384,128]{1,0:T(8,128)}', space=vmem, size = 0x30000, scoped, tag = 'scratch operand']
  %s0 = inlined_call_operand.hbm [shape: bf16[3,128,128], index: 0, kind: input, shape index: {}]
  %s1 = inlined_call_operand.hbm [shape: bf16[128,128], index: 1, kind: input, shape index: {}]
  %s2 = inlined_call_operand.hbm [shape: bf16[128,128], index: 2, kind: input, shape index: {}]
  %s3 = inlined_call_operand.hbm [shape: f32[128,128], index: 3, kind: output, shape index: {}]
  %s4 = sld [smem:[#allocation0]]
  $region42: #{tpu_custom_call.1} parent=0
    _
  %s6 = ssub.s32 1, %s4
  %s7 = scalar_select 0, %s6, %s4
  $region1: #{tpu_custom_call.1} parent=0
    #allocation3 [shape = 'u8[98304]{0}', space=vmem, size = 0x18000, scoped, tag = 'input window, operand 0, single buffered']
    #allocation4 [shape = 's32[1]{0}', space=sflag, size = 0x4, scoped, tag = 'scoped memory for tpu_custom_call.1']
    #allocation5 [shape = 's32[1]{0}', space=sflag, size = 0x4, scoped, tag = 'scoped memory for tpu_custom_call.1']
    #allocation6 [shape = 'u8[32768]{0}', space=vmem, size = 0x8000, scoped, tag = 'input window, operand 1, single buffered']
    #allocation7 [shape = 's32[1]{0}', space=sflag, size = 0x4, scoped, tag = 'scoped memory for tpu_custom_call.1']
    #allocation8 [shape = 'u8[32768]{0}', space=vmem, size = 0x8000, scoped, tag = 'input window, operand 2, single buffered']
    #allocation9 [shape = 'u8[65536]{0}', space=vmem, size = 0x10000, scoped, tag = 'output window, operand 0, single buffered']
    %8 = vsyncpa [#allocation4], 0
    %9 = vsyncpa [#allocation7], 0
    %10 = vsyncpa [#allocation5], 0
    // Predicated region
    $region2: #{tpu_custom_call.1} parent=1 // pred_check
      _
    $region3: #{tpu_custom_call.1} parent=1 // pred_check_branch
      %12 = sbr.rel (0) target = $region5
    $region4: #{tpu_custom_call.1} parent=1 // pred_region
      %s14 = ssub.s32 3072, 3072
      %15 = vsyncadd [#allocation4], %s14
      %s16 = sshll.u32 [#allocation3], 4
      %s17 = int_to_ptr.vmem [resolvable:$true] %s16
      %22 = dma.hbm_to_vmem [thread:$0]  %s0, 3072, %s17, [#allocation4], 64, 64, 4
    $region5: #{tpu_custom_call.1} parent=1 // pred_fallthru
      _
    // Predicated region
    $region6: #{tpu_custom_call.1} parent=1 // pred_check
      _
    $region7: #{tpu_custom_call.1} parent=1 // pred_check_branch
      %24 = sbr.rel (0) target = $region9
    $region8: #{tpu_custom_call.1} parent=1 // pred_region
      %s26 = ssub.s32 1024, 1024
      %27 = vsyncadd [#allocation7], %s26
      %s28 = sshll.u32 [#allocation6], 4
      %s29 = int_to_ptr.vmem [resolvable:$true] %s28
      %34 = dma.hbm_to_vmem [thread:$0]  %s1, 1024, %s29, [#allocation7], 64, 64, 4
    $region9: #{tpu_custom_call.1} parent=1 // pred_fallthru
      _
    // Predicated region
    $region10: #{tpu_custom_call.1} parent=1 // pred_check
      _
    $region11: #{tpu_custom_call.1} parent=1 // pred_check_branch
      %36 = sbr.rel (0) target = $region13
    $region12: #{tpu_custom_call.1} parent=1 // pred_region
      %s38 = ssub.s32 1024, 1024
      %39 = vsyncadd [#allocation7], %s38
      %s40 = sshll.u32 [#allocation8], 4
      %s41 = int_to_ptr.vmem [resolvable:$true] %s40
      %46 = dma.hbm_to_vmem [thread:$0]  %s2, 1024, %s41, [#allocation7], 64, 64, 4
    $region13: #{tpu_custom_call.1} parent=1 // pred_fallthru
      _
    // Predicated region
    $region14: #{tpu_custom_call.1} parent=1 // pred_check
      _
    $region15: #{tpu_custom_call.1} parent=1 // pred_check_branch
      %48 = sbr.rel (0) target = $region17
    $region16: #{tpu_custom_call.1} parent=1 // pred_region
      %49 = dma.done [#allocation4], 3072
    $region17: #{tpu_custom_call.1} parent=1 // pred_fallthru
      _
    // Predicated region
    $region18: #{tpu_custom_call.1} parent=1 // pred_check
      _
    $region19: #{tpu_custom_call.1} parent=1 // pred_check_branch
      %51 = sbr.rel (0) target = $region21
    $region20: #{tpu_custom_call.1} parent=1 // pred_region
      %52 = dma.done [#allocation7], 1024
    $region21: #{tpu_custom_call.1} parent=1 // pred_fallthru
      _
    // Predicated region
    $region22: #{tpu_custom_call.1} parent=1 // pred_check
      _
    $region23: #{tpu_custom_call.1} parent=1 // pred_check_branch
      %54 = sbr.rel (0) target = $region25
    $region24: #{tpu_custom_call.1} parent=1 // pred_region
      %55 = dma.done [#allocation7], 1024
    $region25: #{tpu_custom_call.1} parent=1 // pred_fallthru
      _
    %p57 = scmp.eq.s32.totalorder 0, 0
    // Predicated region
    $region26: #{tpu_custom_call.1} parent=1 // pred_check
      %p58 = pneg %p57
    $region27: #{tpu_custom_call.1} parent=1 // pred_check_branch
      %60 = sbr.rel (%p58) target = $region29
    $region28: #{tpu_custom_call.1} parent=1 // pred_region
      %61 = vst [vmem:[#allocation2] sm:$0xff] 0.0
      %62 = vst [vmem:[#allocation2 + $0x8] sm:$0xff] 0.0
      %63 = vst [vmem:[#allocation2 + $0x10] sm:$0xff] 0.0
      %64 = vst [vmem:[#allocation2 + $0x18] sm:$0xff] 0.0
      %65 = vst [vmem:[#allocation2 + $0x20] sm:$0xff] 0.0
      %66 = vst [vmem:[#allocation2 + $0x28] sm:$0xff] 0.0
      %67 = vst [vmem:[#allocation2 + $0x30] sm:$0xff] 0.0
      %68 = vst [vmem:[#allocation2 + $0x38] sm:$0xff] 0.0
      %69 = vst [vmem:[#allocation2 + $0x40] sm:$0xff] 0.0
      %70 = vst [vmem:[#allocation2 + $0x48] sm:$0xff] 0.0
      %71 = vst [vmem:[#allocation2 + $0x50] sm:$0xff] 0.0
      %72 = vst [vmem:[#allocation2 + $0x58] sm:$0xff] 0.0
      %73 = vst [vmem:[#allocation2 + $0x60] sm:$0xff] 0.0
      %74 = vst [vmem:[#allocation2 + $0x68] sm:$0xff] 0.0
      %75 = vst [vmem:[#allocation2 + $0x70] sm:$0xff] 0.0
      %76 = vst [vmem:[#allocation2 + $0x78] sm:$0xff] 0.0
      %77 = vst [vmem:[#allocation2 + $0x80] sm:$0xff] 0.0
      %78 = vst [vmem:[#allocation2 + $0x88] sm:$0xff] 0.0
      %79 = vst [vmem:[#allocation2 + $0x90] sm:$0xff] 0.0
      %80 = vst [vmem:[#allocation2 + $0x98] sm:$0xff] 0.0
      %81 = vst [vmem:[#allocation2 + $0xa0] sm:$0xff] 0.0
      %82 = vst [vmem:[#allocation2 + $0xa8] sm:$0xff] 0.0
      %83 = vst [vmem:[#allocation2 + $0xb0] sm:$0xff] 0.0
      %84 = vst [vmem:[#allocation2 + $0xb8] sm:$0xff] 0.0
      %85 = vst [vmem:[#allocation2 + $0xc0] sm:$0xff] 0.0
      %86 = vst [vmem:[#allocation2 + $0xc8] sm:$0xff] 0.0
      %87 = vst [vmem:[#allocation2 + $0xd0] sm:$0xff] 0.0
      %88 = vst [vmem:[#allocation2 + $0xd8] sm:$0xff] 0.0
      %89 = vst [vmem:[#allocation2 + $0xe0] sm:$0xff] 0.0
      %90 = vst [vmem:[#allocation2 + $0xe8] sm:$0xff] 0.0
      %91 = vst [vmem:[#allocation2 + $0xf0] sm:$0xff] 0.0
      %92 = vst [vmem:[#allocation2 + $0xf8] sm:$0xff] 0.0
      %93 = vst [vmem:[#allocation2 + $0x100] sm:$0xff] 0.0
      %94 = vst [vmem:[#allocation2 + $0x108] sm:$0xff] 0.0
      %95 = vst [vmem:[#allocation2 + $0x110] sm:$0xff] 0.0
      %96 = vst [vmem:[#allocation2 + $0x118] sm:$0xff] 0.0
      %97 = vst [vmem:[#allocation2 + $0x120] sm:$0xff] 0.0
      %98 = vst [vmem:[#allocation2 + $0x128] sm:$0xff] 0.0
      %99 = vst [vmem:[#allocation2 + $0x130] sm:$0xff] 0.0
      %100 = vst [vmem:[#allocation2 + $0x138] sm:$0xff] 0.0
      %101 = vst [vmem:[#allocation2 + $0x140] sm:$0xff] 0.0
      %102 = vst [vmem:[#allocation2 + $0x148] sm:$0xff] 0.0
      %103 = vst [vmem:[#allocation2 + $0x150] sm:$0xff] 0.0
      %104 = vst [vmem:[#allocation2 + $0x158] sm:$0xff] 0.0
      %105 = vst [vmem:[#allocation2 + $0x160] sm:$0xff] 0.0
      %106 = vst [vmem:[#allocation2 + $0x168] sm:$0xff] 0.0
      %107 = vst [vmem:[#allocation2 + $0x170] sm:$0xff] 0.0
      %108 = vst [vmem:[#allocation2 + $0x178] sm:$0xff] 0.0
    $region29: #{tpu_custom_call.1} parent=1 // pred_fallthru
      _
    %v109 = vld [vmem:[#allocation3] sm:$0xf]
    %v110 = vld [vmem:[#allocation3 + $0x4] sm:$0xf]
    %v111 = vld [vmem:[#allocation3 + $0x8] sm:$0xf]
    %v112 = vld [vmem:[#allocation3 + $0xc] sm:$0xf]
    %v113 = vld [vmem:[#allocation3 + $0x10] sm:$0xf]
    %v114 = vld [vmem:[#allocation3 + $0x14] sm:$0xf]
    %v115 = vld [vmem:[#allocation3 + $0x18] sm:$0xf]
    %v116 = vld [vmem:[#allocation3 + $0x1c] sm:$0xf]
    %v117 = vld [vmem:[#allocation3 + $0x20] sm:$0xf]
    %v118 = vld [vmem:[#allocation3 + $0x24] sm:$0xf]
    %v119 = vld [vmem:[#allocation3 + $0x28] sm:$0xf]
    %v120 = vld [vmem:[#allocation3 + $0x2c] sm:$0xf]
    %v121 = vld [vmem:[#allocation3 + $0x30] sm:$0xf]
    %v122 = vld [vmem:[#allocation3 + $0x34] sm:$0xf]
    %v123 = vld [vmem:[#allocation3 + $0x38] sm:$0xf]
    %v124 = vld [vmem:[#allocation3 + $0x3c] sm:$0xf]
    %v125 = vld [vmem:[#allocation3 + $0x40] sm:$0xf]
    %v126 = vld [vmem:[#allocation3 + $0x44] sm:$0xf]
    %v127 = vld [vmem:[#allocation3 + $0x48] sm:$0xf]
    %v128 = vld [vmem:[#allocation3 + $0x4c] sm:$0xf]
    %v129 = vld [vmem:[#allocation3 + $0x50] sm:$0xf]
    %v130 = vld [vmem:[#allocation3 + $0x54] sm:$0xf]
    %v131 = vld [vmem:[#allocation3 + $0x58] sm:$0xf]
    %v132 = vld [vmem:[#allocation3 + $0x5c] sm:$0xf]
    %v133 = vld [vmem:[#allocation3 + $0x60] sm:$0xf]
    %v134 = vld [vmem:[#allocation3 + $0x64] sm:$0xf]
    %v135 = vld [vmem:[#allocation3 + $0x68] sm:$0xf]
    %v136 = vld [vmem:[#allocation3 + $0x6c] sm:$0xf]
    %v137 = vld [vmem:[#allocation3 + $0x70] sm:$0xf]
    %v138 = vld [vmem:[#allocation3 + $0x74] sm:$0xf]
    %v139 = vld [vmem:[#allocation3 + $0x78] sm:$0xf]
    %v140 = vld [vmem:[#allocation3 + $0x7c] sm:$0xf]
    %v141 = vld [vmem:[#allocation3 + $0x80] sm:$0xf]
    %v142 = vld [vmem:[#allocation3 + $0x84] sm:$0xf]
    %v143 = vld [vmem:[#allocation3 + $0x88] sm:$0xf]
    %v144 = vld [vmem:[#allocation3 + $0x8c] sm:$0xf]
    %v145 = vld [vmem:[#allocation3 + $0x90] sm:$0xf]
    %v146 = vld [vmem:[#allocation3 + $0x94] sm:$0xf]
    %v147 = vld [vmem:[#allocation3 + $0x98] sm:$0xf]
    %v148 = vld [vmem:[#allocation3 + $0x9c] sm:$0xf]
    %v149 = vld [vmem:[#allocation3 + $0xa0] sm:$0xf]
    %v150 = vld [vmem:[#allocation3 + $0xa4] sm:$0xf]
    %v151 = vld [vmem:[#allocation3 + $0xa8] sm:$0xf]
    %v152 = vld [vmem:[#allocation3 + $0xac] sm:$0xf]
    %v153 = vld [vmem:[#allocation3 + $0xb0] sm:$0xf]
    %v154 = vld [vmem:[#allocation3 + $0xb4] sm:$0xf]
    %v155 = vld [vmem:[#allocation3 + $0xb8] sm:$0xf]
    %v156 = vld [vmem:[#allocation3 + $0xbc] sm:$0xf]
    %v157 = vld [vmem:[#allocation2] sm:$0xff]
    %v158 = vld [vmem:[#allocation2 + $0x8] sm:$0xff]
    %v159 = vld [vmem:[#allocation2 + $0x10] sm:$0xff]
    %v160 = vld [vmem:[#allocation2 + $0x18] sm:$0xff]
    %v161 = vld [vmem:[#allocation2 + $0x20] sm:$0xff]
    %v162 = vld [vmem:[#allocation2 + $0x28] sm:$0xff]
    %v163 = vld [vmem:[#allocation2 + $0x30] sm:$0xff]
    %v164 = vld [vmem:[#allocation2 + $0x38] sm:$0xff]
    %v165 = vld [vmem:[#allocation2 + $0x40] sm:$0xff]
    %v166 = vld [vmem:[#allocation2 + $0x48] sm:$0xff]
    %v167 = vld [vmem:[#allocation2 + $0x50] sm:$0xff]
    %v168 = vld [vmem:[#allocation2 + $0x58] sm:$0xff]
    %v169 = vld [vmem:[#allocation2 + $0x60] sm:$0xff]
    %v170 = vld [vmem:[#allocation2 + $0x68] sm:$0xff]
    %v171 = vld [vmem:[#allocation2 + $0x70] sm:$0xff]
    %v172 = vld [vmem:[#allocation2 + $0x78] sm:$0xff]
    %v173 = vld [vmem:[#allocation2 + $0x80] sm:$0xff]
    %v174 = vld [vmem:[#allocation2 + $0x88] sm:$0xff]
    %v175 = vld [vmem:[#allocation2 + $0x90] sm:$0xff]
    %v176 = vld [vmem:[#allocation2 + $0x98] sm:$0xff]
    %v177 = vld [vmem:[#allocation2 + $0xa0] sm:$0xff]
    %v178 = vld [vmem:[#allocation2 + $0xa8] sm:$0xff]
    %v179 = vld [vmem:[#allocation2 + $0xb0] sm:$0xff]
    %v180 = vld [vmem:[#allocation2 + $0xb8] sm:$0xff]
    %v181 = vld [vmem:[#allocation2 + $0xc0] sm:$0xff]
    %v182 = vld [vmem:[#allocation2 + $0xc8] sm:$0xff]
    %v183 = vld [vmem:[#allocation2 + $0xd0] sm:$0xff]
    %v184 = vld [vmem:[#allocation2 + $0xd8] sm:$0xff]
    %v185 = vld [vmem:[#allocation2 + $0xe0] sm:$0xff]
    %v186 = vld [vmem:[#allocation2 + $0xe8] sm:$0xff]
    %v187 = vld [vmem:[#allocation2 + $0xf0] sm:$0xff]
    %v188 = vld [vmem:[#allocation2 + $0xf8] sm:$0xff]
    %v189 = vld [vmem:[#allocation2 + $0x100] sm:$0xff]
    %v190 = vld [vmem:[#allocation2 + $0x108] sm:$0xff]
    %v191 = vld [vmem:[#allocation2 + $0x110] sm:$0xff]
    %v192 = vld [vmem:[#allocation2 + $0x118] sm:$0xff]
    %v193 = vld [vmem:[#allocation2 + $0x120] sm:$0xff]
    %v194 = vld [vmem:[#allocation2 + $0x128] sm:$0xff]
    %v195 = vld [vmem:[#allocation2 + $0x130] sm:$0xff]
    %v196 = vld [vmem:[#allocation2 + $0x138] sm:$0xff]
    %v197 = vld [vmem:[#allocation2 + $0x140] sm:$0xff]
    %v198 = vld [vmem:[#allocation2 + $0x148] sm:$0xff]
    %v199 = vld [vmem:[#allocation2 + $0x150] sm:$0xff]
    %v200 = vld [vmem:[#allocation2 + $0x158] sm:$0xff]
    %v201 = vld [vmem:[#allocation2 + $0x160] sm:$0xff]
    %v202 = vld [vmem:[#allocation2 + $0x168] sm:$0xff]
    %v203 = vld [vmem:[#allocation2 + $0x170] sm:$0xff]
    %v204 = vld [vmem:[#allocation2 + $0x178] sm:$0xff]
    %v205 = vld [vmem:[#allocation6] sm:$0xf]
    %v206 = vld [vmem:[#allocation6 + $0x4] sm:$0xf]
    %v207 = vld [vmem:[#allocation6 + $0x8] sm:$0xf]
    %v208 = vld [vmem:[#allocation6 + $0xc] sm:$0xf]
    %v209 = vld [vmem:[#allocation6 + $0x10] sm:$0xf]
    %v210 = vld [vmem:[#allocation6 + $0x14] sm:$0xf]
    %v211 = vld [vmem:[#allocation6 + $0x18] sm:$0xf]
    %v212 = vld [vmem:[#allocation6 + $0x1c] sm:$0xf]
    %v213 = vld [vmem:[#allocation6 + $0x20] sm:$0xf]
    %v214 = vld [vmem:[#allocation6 + $0x24] sm:$0xf]
    %v215 = vld [vmem:[#allocation6 + $0x28] sm:$0xf]
    %v216 = vld [vmem:[#allocation6 + $0x2c] sm:$0xf]
    %v217 = vld [vmem:[#allocation6 + $0x30] sm:$0xf]
    %v218 = vld [vmem:[#allocation6 + $0x34] sm:$0xf]
    %v219 = vld [vmem:[#allocation6 + $0x38] sm:$0xf]
    %v220 = vld [vmem:[#allocation6 + $0x3c] sm:$0xf]
    %v269 = vunpack.c.l.b16 %v109
    %v270 = vunpack.c.l.b16 %v110
    %v271 = vunpack.c.l.b16 %v111
    %v272 = vunpack.c.l.b16 %v112
    %v273 = vunpack.c.l.b16 %v113
    %v274 = vunpack.c.l.b16 %v114
    %v275 = vunpack.c.l.b16 %v115
    %v276 = vunpack.c.l.b16 %v116
    %v277 = vunpack.c.l.b16 %v117
    %v278 = vunpack.c.l.b16 %v118
    %v279 = vunpack.c.l.b16 %v119
    %v280 = vunpack.c.l.b16 %v120
    %v281 = vunpack.c.l.b16 %v121
    %v282 = vunpack.c.l.b16 %v122
    %v283 = vunpack.c.l.b16 %v123
    %v284 = vunpack.c.l.b16 %v124
    %v285 = vunpack.c.l.b16 %v125
    %v286 = vunpack.c.l.b16 %v126
    %v287 = vunpack.c.l.b16 %v127
    %v288 = vunpack.c.l.b16 %v128
    %v289 = vunpack.c.l.b16 %v129
    %v290 = vunpack.c.l.b16 %v130
    %v291 = vunpack.c.l.b16 %v131
    %v292 = vunpack.c.l.b16 %v132
    %v293 = vunpack.c.l.b16 %v133
    %v294 = vunpack.c.l.b16 %v134
    %v295 = vunpack.c.l.b16 %v135
    %v296 = vunpack.c.l.b16 %v136
    %v297 = vunpack.c.l.b16 %v137
    %v298 = vunpack.c.l.b16 %v138
    %v299 = vunpack.c.l.b16 %v139
    %v300 = vunpack.c.l.b16 %v140
    %v301 = vunpack.c.l.b16 %v141
    %v302 = vunpack.c.l.b16 %v142
    %v303 = vunpack.c.l.b16 %v143
    %v304 = vunpack.c.l.b16 %v144
    %v305 = vunpack.c.l.b16 %v145
    %v306 = vunpack.c.l.b16 %v146
    %v307 = vunpack.c.l.b16 %v147
    %v308 = vunpack.c.l.b16 %v148
    %v309 = vunpack.c.l.b16 %v149
    %v310 = vunpack.c.l.b16 %v150
    %v311 = vunpack.c.l.b16 %v151
    %v312 = vunpack.c.l.b16 %v152
    %v313 = vunpack.c.l.b16 %v153
    %v314 = vunpack.c.l.b16 %v154
    %v315 = vunpack.c.l.b16 %v155
    %v316 = vunpack.c.l.b16 %v156
    %v317 = vpack.c.b16 %v270, %v269
    %v318 = vpack.c.b16 %v272, %v271
    %v319 = vpack.c.b16 %v274, %v273
    %v320 = vpack.c.b16 %v276, %v275
    %v321 = vpack.c.b16 %v278, %v277
    %v322 = vpack.c.b16 %v280, %v279
    %v323 = vpack.c.b16 %v282, %v281
    %v324 = vpack.c.b16 %v284, %v283
    %v325 = vpack.c.b16 %v286, %v285
    %v326 = vpack.c.b16 %v288, %v287
    %v327 = vpack.c.b16 %v290, %v289
    %v328 = vpack.c.b16 %v292, %v291
    %v329 = vpack.c.b16 %v294, %v293
    %v330 = vpack.c.b16 %v296, %v295
    %v331 = vpack.c.b16 %v298, %v297
    %v332 = vpack.c.b16 %v300, %v299
    %v333 = vpack.c.b16 %v302, %v301
    %v334 = vpack.c.b16 %v304, %v303
    %v335 = vpack.c.b16 %v306, %v305
    %v336 = vpack.c.b16 %v308, %v307
    %v337 = vpack.c.b16 %v310, %v309
    %v338 = vpack.c.b16 %v312, %v311
    %v339 = vpack.c.b16 %v314, %v313
    %v340 = vpack.c.b16 %v316, %v315
    %v381 = vunpack.c.l.b16 %v205
    %v382 = vunpack.c.l.b16 %v206
    %v383 = vunpack.c.l.b16 %v207
    %v384 = vunpack.c.l.b16 %v208
    %v385 = vunpack.c.l.b16 %v209
    %v386 = vunpack.c.l.b16 %v210
    %v387 = vunpack.c.l.b16 %v211
    %v388 = vunpack.c.l.b16 %v212
    %v389 = vunpack.c.l.b16 %v213
    %v390 = vunpack.c.l.b16 %v214
    %v391 = vunpack.c.l.b16 %v215
    %v392 = vunpack.c.l.b16 %v216
    %v393 = vunpack.c.l.b16 %v217
    %v394 = vunpack.c.l.b16 %v218
    %v395 = vunpack.c.l.b16 %v219
    %v396 = vunpack.c.l.b16 %v220
    %v397 = vpack.c.b16 %v382, %v381
    %v398 = vpack.c.b16 %v384, %v383
    %v399 = vpack.c.b16 %v386, %v385
    %v400 = vpack.c.b16 %v388, %v387
    %v401 = vpack.c.b16 %v390, %v389
    %v402 = vpack.c.b16 %v392, %v391
    %v403 = vpack.c.b16 %v394, %v393
    %v404 = vpack.c.b16 %v396, %v395
    %413 = vmatprep.subr.bf16.mxu0 0
    %414 = vmatpush1.bf16.msra.mxu0 %v404
    %415 = vmatprep.subr.bf16.mxu0 0
    %416 = vmatpush1.bf16.msra.mxu0 %v403
    %417 = vmatprep.subr.bf16.mxu0 0
    %418 = vmatpush1.bf16.msra.mxu0 %v402
    %419 = vmatprep.subr.bf16.mxu0 0
    %420 = vmatpush1.bf16.msra.mxu0 %v401
    %421 = vmatprep.subr.bf16.mxu0 0
    %422 = vmatpush1.bf16.msra.mxu0 %v400
    %423 = vmatprep.subr.bf16.mxu0 0
    %424 = vmatpush1.bf16.msra.mxu0 %v399
    %425 = vmatprep.subr.bf16.mxu0 0
    %426 = vmatpush1.bf16.msra.mxu0 %v398
    %427 = vmatprep.subr.bf16.mxu0 0
    %428 = vmatpush1.bf16.msra.mxu0 %v397
    %429 = vmatprep.subr.bf16.mxu0 0
    %430 = vmatpush2.bf16.msra.mxu0 0
    %431 = vmatprep.subr.bf16.mxu0 0
    %432 = vmatpush2.bf16.msra.mxu0 0
    %433 = vmatprep.subr.bf16.mxu0 0
    %434 = vmatpush2.bf16.msra.mxu0 0
    %435 = vmatprep.subr.bf16.mxu0 0
    %436 = vmatpush2.bf16.msra.mxu0 0
    %437 = vmatprep.subr.bf16.mxu0 0
    %438 = vmatpush2.bf16.msra.mxu0 0
    %439 = vmatprep.subr.bf16.mxu0 0
    %440 = vmatpush2.bf16.msra.mxu0 0
    %441 = vmatprep.subr.bf16.mxu0 0
    %442 = vmatpush2.bf16.msra.mxu0 0
    %443 = vmatprep.subr.bf16.mxu0 0
    %444 = vmatpush2.bf16.msra.mxu0 0
    %445 = vmatprep.mubr.bf16.mxu0 0
    %446 = vmatmul.mubr.bf16.gmra.mxu0 %v317
    %v447 = vpop.f32.mrf.mxu0
    %v448 = vadd.f32 0.0, %v447
    %v449 = vpop.f32.mrf.mxu0
    %v450 = vpop.f32.mrf.mxu0
    %v451 = vadd.f32 0.0, %v450
    %v452 = vpop.f32.mrf.mxu0
    %453 = vmatprep.mubr.bf16.mxu0 0
    %454 = vmatmul.mubr.bf16.gmra.mxu0 %v318
    %v455 = vpop.f32.mrf.mxu0
    %v456 = vadd.f32 0.0, %v455
    %v457 = vpop.f32.mrf.mxu0
    %v458 = vpop.f32.mrf.mxu0
    %v459 = vadd.f32 0.0, %v458
    %v460 = vpop.f32.mrf.mxu0
    %461 = vmatprep.mubr.bf16.mxu0 0
    %462 = vmatmul.mubr.bf16.gmra.mxu0 %v319
    %v463 = vpop.f32.mrf.mxu0
    %v464 = vadd.f32 0.0, %v463
    %v465 = vpop.f32.mrf.mxu0
    %v466 = vpop.f32.mrf.mxu0
    %v467 = vadd.f32 0.0, %v466
    %v468 = vpop.f32.mrf.mxu0
    %469 = vmatprep.mubr.bf16.mxu0 0
    %470 = vmatmul.mubr.bf16.gmra.mxu0 %v320
    %v471 = vpop.f32.mrf.mxu0
    %v472 = vadd.f32 0.0, %v471
    %v473 = vpop.f32.mrf.mxu0
    %v474 = vpop.f32.mrf.mxu0
    %v475 = vadd.f32 0.0, %v474
    %v476 = vpop.f32.mrf.mxu0
    %477 = vmatprep.mubr.bf16.mxu0 0
    %478 = vmatmul.mubr.bf16.gmra.mxu0 %v321
    %v479 = vpop.f32.mrf.mxu0
    %v480 = vadd.f32 0.0, %v479
    %v481 = vpop.f32.mrf.mxu0
    %v482 = vpop.f32.mrf.mxu0
    %v483 = vadd.f32 0.0, %v482
    %v484 = vpop.f32.mrf.mxu0
    %485 = vmatprep.mubr.bf16.mxu0 0
    %486 = vmatmul.mubr.bf16.gmra.mxu0 %v322
    %v487 = vpop.f32.mrf.mxu0
    %v488 = vadd.f32 0.0, %v487
    %v489 = vpop.f32.mrf.mxu0
    %v490 = vpop.f32.mrf.mxu0
    %v491 = vadd.f32 0.0, %v490
    %v492 = vpop.f32.mrf.mxu0
    %493 = vmatprep.mubr.bf16.mxu0 0
    %494 = vmatmul.mubr.bf16.gmra.mxu0 %v323
    %v495 = vpop.f32.mrf.mxu0
    %v496 = vadd.f32 0.0, %v495
    %v497 = vpop.f32.mrf.mxu0
    %v498 = vpop.f32.mrf.mxu0
    %v499 = vadd.f32 0.0, %v498
    %v500 = vpop.f32.mrf.mxu0
    %501 = vmatprep.mubr.bf16.mxu0 0
    %502 = vmatmul.mubr.bf16.gmra.mxu0 %v324
    %v503 = vpop.f32.mrf.mxu0
    %v504 = vadd.f32 0.0, %v503
    %v505 = vpop.f32.mrf.mxu0
    %v506 = vpop.f32.mrf.mxu0
    %v507 = vadd.f32 0.0, %v506
    %v508 = vpop.f32.mrf.mxu0
    %509 = vmatprep.mubr.bf16.mxu0 0
    %510 = vmatmul.mubr.bf16.gmra.mxu0 %v325
    %v511 = vpop.f32.mrf.mxu0
    %v512 = vadd.f32 0.0, %v511
    %v513 = vpop.f32.mrf.mxu0
    %v514 = vpop.f32.mrf.mxu0
    %v515 = vadd.f32 0.0, %v514
    %v516 = vpop.f32.mrf.mxu0
    %517 = vmatprep.mubr.bf16.mxu0 0
    %518 = vmatmul.mubr.bf16.gmra.mxu0 %v326
    %v519 = vpop.f32.mrf.mxu0
    %v520 = vadd.f32 0.0, %v519
    %v521 = vpop.f32.mrf.mxu0
    %v522 = vpop.f32.mrf.mxu0
    %v523 = vadd.f32 0.0, %v522
    %v524 = vpop.f32.mrf.mxu0
    %525 = vmatprep.mubr.bf16.mxu0 0
    %526 = vmatmul.mubr.bf16.gmra.mxu0 %v327
    %v527 = vpop.f32.mrf.mxu0
    %v528 = vadd.f32 0.0, %v527
    %v529 = vpop.f32.mrf.mxu0
    %v530 = vpop.f32.mrf.mxu0
    %v531 = vadd.f32 0.0, %v530
    %v532 = vpop.f32.mrf.mxu0
    %533 = vmatprep.mubr.bf16.mxu0 0
    %534 = vmatmul.mubr.bf16.gmra.mxu0 %v328
    %v535 = vpop.f32.mrf.mxu0
    %v536 = vadd.f32 0.0, %v535
    %v537 = vpop.f32.mrf.mxu0
    %v538 = vpop.f32.mrf.mxu0
    %v539 = vadd.f32 0.0, %v538
    %v540 = vpop.f32.mrf.mxu0
    %541 = vmatprep.mubr.bf16.mxu0 0
    %542 = vmatmul.mubr.bf16.gmra.mxu0 %v329
    %v543 = vpop.f32.mrf.mxu0
    %v544 = vadd.f32 0.0, %v543
    %v545 = vpop.f32.mrf.mxu0
    %v546 = vpop.f32.mrf.mxu0
    %v547 = vadd.f32 0.0, %v546
    %v548 = vpop.f32.mrf.mxu0
    %549 = vmatprep.mubr.bf16.mxu0 0
    %550 = vmatmul.mubr.bf16.gmra.mxu0 %v330
    %v551 = vpop.f32.mrf.mxu0
    %v552 = vadd.f32 0.0, %v551
    %v553 = vpop.f32.mrf.mxu0
    %v554 = vpop.f32.mrf.mxu0
    %v555 = vadd.f32 0.0, %v554
    %v556 = vpop.f32.mrf.mxu0
    %557 = vmatprep.mubr.bf16.mxu0 0
    %558 = vmatmul.mubr.bf16.gmra.mxu0 %v331
    %v559 = vpop.f32.mrf.mxu0
    %v560 = vadd.f32 0.0, %v559
    %v561 = vpop.f32.mrf.mxu0
    %v562 = vpop.f32.mrf.mxu0
    %v563 = vadd.f32 0.0, %v562
    %v564 = vpop.f32.mrf.mxu0
    %565 = vmatprep.mubr.bf16.mxu0 0
    %566 = vmatmul.mubr.bf16.gmra.mxu0 %v332
    %v567 = vpop.f32.mrf.mxu0
    %v568 = vadd.f32 0.0, %v567
    %v569 = vpop.f32.mrf.mxu0
    %v570 = vpop.f32.mrf.mxu0
    %v571 = vadd.f32 0.0, %v570
    %v572 = vpop.f32.mrf.mxu0
    %573 = vmatprep.mubr.bf16.mxu0 0
    %574 = vmatmul.mubr.bf16.gmra.mxu0 %v333
    %v575 = vpop.f32.mrf.mxu0
    %v576 = vadd.f32 0.0, %v575
    %v577 = vpop.f32.mrf.mxu0
    %v578 = vpop.f32.mrf.mxu0
    %v579 = vadd.f32 0.0, %v578
    %v580 = vpop.f32.mrf.mxu0
    %581 = vmatprep.mubr.bf16.mxu0 0
    %582 = vmatmul.mubr.bf16.gmra.mxu0 %v334
    %v583 = vpop.f32.mrf.mxu0
    %v584 = vadd.f32 0.0, %v583
    %v585 = vpop.f32.mrf.mxu0
    %v586 = vpop.f32.mrf.mxu0
    %v587 = vadd.f32 0.0, %v586
    %v588 = vpop.f32.mrf.mxu0
    %589 = vmatprep.mubr.bf16.mxu0 0
    %590 = vmatmul.mubr.bf16.gmra.mxu0 %v335
    %v591 = vpop.f32.mrf.mxu0
    %v592 = vadd.f32 0.0, %v591
    %v593 = vpop.f32.mrf.mxu0
    %v594 = vpop.f32.mrf.mxu0
    %v595 = vadd.f32 0.0, %v594
    %v596 = vpop.f32.mrf.mxu0
    %597 = vmatprep.mubr.bf16.mxu0 0
    %598 = vmatmul.mubr.bf16.gmra.mxu0 %v336
    %v599 = vpop.f32.mrf.mxu0
    %v600 = vadd.f32 0.0, %v599
    %v601 = vpop.f32.mrf.mxu0
    %v602 = vpop.f32.mrf.mxu0
    %v603 = vadd.f32 0.0, %v602
    %v604 = vpop.f32.mrf.mxu0
    %605 = vmatprep.mubr.bf16.mxu0 0
    %606 = vmatmul.mubr.bf16.gmra.mxu0 %v337
    %v607 = vpop.f32.mrf.mxu0
    %v608 = vadd.f32 0.0, %v607
    %v609 = vpop.f32.mrf.mxu0
    %v610 = vpop.f32.mrf.mxu0
    %v611 = vadd.f32 0.0, %v610
    %v612 = vpop.f32.mrf.mxu0
    %613 = vmatprep.mubr.bf16.mxu0 0
    %614 = vmatmul.mubr.bf16.gmra.mxu0 %v338
    %v615 = vpop.f32.mrf.mxu0
    %v616 = vadd.f32 0.0, %v615
    %v617 = vpop.f32.mrf.mxu0
    %v618 = vpop.f32.mrf.mxu0
    %v619 = vadd.f32 0.0, %v618
    %v620 = vpop.f32.mrf.mxu0
    %621 = vmatprep.mubr.bf16.mxu0 0
    %622 = vmatmul.mubr.bf16.gmra.mxu0 %v339
    %v623 = vpop.f32.mrf.mxu0
    %v624 = vadd.f32 0.0, %v623
    %v625 = vpop.f32.mrf.mxu0
    %v626 = vpop.f32.mrf.mxu0
    %v627 = vadd.f32 0.0, %v626
    %v628 = vpop.f32.mrf.mxu0
    %629 = vmatprep.mubr.bf16.mxu0 0
    %630 = vmatmul.mubr.bf16.gmra.mxu0 %v340
    %v631 = vpop.f32.mrf.mxu0
    %v632 = vadd.f32 0.0, %v631
    %v633 = vpop.f32.mrf.mxu0
    %v634 = vpop.f32.mrf.mxu0
    %v635 = vadd.f32 0.0, %v634
    %v636 = vpop.f32.mrf.mxu0
    %637 = vdwg.mxu0
    %v638 = vadd.f32 %v157, %v448
    %v639 = vadd.f32 %v158, %v451
    %v640 = vadd.f32 %v159, %v456
    %v641 = vadd.f32 %v160, %v459
    %v642 = vadd.f32 %v161, %v464
    %v643 = vadd.f32 %v162, %v467
    %v644 = vadd.f32 %v163, %v472
    %v645 = vadd.f32 %v164, %v475
    %v646 = vadd.f32 %v165, %v480
    %v647 = vadd.f32 %v166, %v483
    %v648 = vadd.f32 %v167, %v488
    %v649 = vadd.f32 %v168, %v491
    %v650 = vadd.f32 %v169, %v496
    %v651 = vadd.f32 %v170, %v499
    %v652 = vadd.f32 %v171, %v504
    %v653 = vadd.f32 %v172, %v507
    %v654 = vadd.f32 %v173, %v512
    %v655 = vadd.f32 %v174, %v515
    %v656 = vadd.f32 %v175, %v520
    %v657 = vadd.f32 %v176, %v523
    %v658 = vadd.f32 %v177, %v528
    %v659 = vadd.f32 %v178, %v531
    %v660 = vadd.f32 %v179, %v536
    %v661 = vadd.f32 %v180, %v539
    %v662 = vadd.f32 %v181, %v544
    %v663 = vadd.f32 %v182, %v547
    %v664 = vadd.f32 %v183, %v552
    %v665 = vadd.f32 %v184, %v555
    %v666 = vadd.f32 %v185, %v560
    %v667 = vadd.f32 %v186, %v563
    %v668 = vadd.f32 %v187, %v568
    %v669 = vadd.f32 %v188, %v571
    %v670 = vadd.f32 %v189, %v576
    %v671 = vadd.f32 %v190, %v579
    %v672 = vadd.f32 %v191, %v584
    %v673 = vadd.f32 %v192, %v587
    %v674 = vadd.f32 %v193, %v592
    %v675 = vadd.f32 %v194, %v595
    %v676 = vadd.f32 %v195, %v600
    %v677 = vadd.f32 %v196, %v603
    %v678 = vadd.f32 %v197, %v608
    %v679 = vadd.f32 %v198, %v611
    %v680 = vadd.f32 %v199, %v616
    %v681 = vadd.f32 %v200, %v619
    %v682 = vadd.f32 %v201, %v624
    %v683 = vadd.f32 %v202, %v627
    %v684 = vadd.f32 %v203, %v632
    %v685 = vadd.f32 %v204, %v635
    %686 = vst [vmem:[#allocation2] sm:$0xff] %v638
    %687 = vst [vmem:[#allocation2 + $0x8] sm:$0xff] %v639
    %688 = vst [vmem:[#allocation2 + $0x10] sm:$0xff] %v640
    %689 = vst [vmem:[#allocation2 + $0x18] sm:$0xff] %v641
    %690 = vst [vmem:[#allocation2 + $0x20] sm:$0xff] %v642
    %691 = vst [vmem:[#allocation2 + $0x28] sm:$0xff] %v643
    %692 = vst [vmem:[#allocation2 + $0x30] sm:$0xff] %v644
    %693 = vst [vmem:[#allocation2 + $0x38] sm:$0xff] %v645
    %694 = vst [vmem:[#allocation2 + $0x40] sm:$0xff] %v646
    %695 = vst [vmem:[#allocation2 + $0x48] sm:$0xff] %v647
    %696 = vst [vmem:[#allocation2 + $0x50] sm:$0xff] %v648
    %697 = vst [vmem:[#allocation2 + $0x58] sm:$0xff] %v649
    %698 = vst [vmem:[#allocation2 + $0x60] sm:$0xff] %v650
    %699 = vst [vmem:[#allocation2 + $0x68] sm:$0xff] %v651
    %700 = vst [vmem:[#allocation2 + $0x70] sm:$0xff] %v652
    %701 = vst [vmem:[#allocation2 + $0x78] sm:$0xff] %v653
    %702 = vst [vmem:[#allocation2 + $0x80] sm:$0xff] %v654
    %703 = vst [vmem:[#allocation2 + $0x88] sm:$0xff] %v655
    %704 = vst [vmem:[#allocation2 + $0x90] sm:$0xff] %v656
    %705 = vst [vmem:[#allocation2 + $0x98] sm:$0xff] %v657
    %706 = vst [vmem:[#allocation2 + $0xa0] sm:$0xff] %v658
    %707 = vst [vmem:[#allocation2 + $0xa8] sm:$0xff] %v659
    %708 = vst [vmem:[#allocation2 + $0xb0] sm:$0xff] %v660
    %709 = vst [vmem:[#allocation2 + $0xb8] sm:$0xff] %v661
    %710 = vst [vmem:[#allocation2 + $0xc0] sm:$0xff] %v662
    %711 = vst [vmem:[#allocation2 + $0xc8] sm:$0xff] %v663
    %712 = vst [vmem:[#allocation2 + $0xd0] sm:$0xff] %v664
    %713 = vst [vmem:[#allocation2 + $0xd8] sm:$0xff] %v665
    %714 = vst [vmem:[#allocation2 + $0xe0] sm:$0xff] %v666
    %715 = vst [vmem:[#allocation2 + $0xe8] sm:$0xff] %v667
    %716 = vst [vmem:[#allocation2 + $0xf0] sm:$0xff] %v668
    %717 = vst [vmem:[#allocation2 + $0xf8] sm:$0xff] %v669
    %718 = vst [vmem:[#allocation2 + $0x100] sm:$0xff] %v670
    %719 = vst [vmem:[#allocation2 + $0x108] sm:$0xff] %v671
    %720 = vst [vmem:[#allocation2 + $0x110] sm:$0xff] %v672
    %721 = vst [vmem:[#allocation2 + $0x118] sm:$0xff] %v673
    %722 = vst [vmem:[#allocation2 + $0x120] sm:$0xff] %v674
    %723 = vst [vmem:[#allocation2 + $0x128] sm:$0xff] %v675
    %724 = vst [vmem:[#allocation2 + $0x130] sm:$0xff] %v676
    %725 = vst [vmem:[#allocation2 + $0x138] sm:$0xff] %v677
    %726 = vst [vmem:[#allocation2 + $0x140] sm:$0xff] %v678
    %727 = vst [vmem:[#allocation2 + $0x148] sm:$0xff] %v679
    %728 = vst [vmem:[#allocation2 + $0x150] sm:$0xff] %v680
    %729 = vst [vmem:[#allocation2 + $0x158] sm:$0xff] %v681
    %730 = vst [vmem:[#allocation2 + $0x160] sm:$0xff] %v682
    %731 = vst [vmem:[#allocation2 + $0x168] sm:$0xff] %v683
    %732 = vst [vmem:[#allocation2 + $0x170] sm:$0xff] %v684
    %733 = vst [vmem:[#allocation2 + $0x178] sm:$0xff] %v685
    %v734 = vld [vmem:[#allocation2] sm:$0xff]
    %v735 = vld [vmem:[#allocation2 + $0x8] sm:$0xff]
    %v736 = vld [vmem:[#allocation2 + $0x10] sm:$0xff]
    %v737 = vld [vmem:[#allocation2 + $0x18] sm:$0xff]
    %v738 = vld [vmem:[#allocation2 + $0x20] sm:$0xff]
    %v739 = vld [vmem:[#allocation2 + $0x28] sm:$0xff]
    %v740 = vld [vmem:[#allocation2 + $0x30] sm:$0xff]
    %v741 = vld [vmem:[#allocation2 + $0x38] sm:$0xff]
    %v742 = vld [vmem:[#allocation2 + $0x40] sm:$0xff]
    %v743 = vld [vmem:[#allocation2 + $0x48] sm:$0xff]
    %v744 = vld [vmem:[#allocation2 + $0x50] sm:$0xff]
    %v745 = vld [vmem:[#allocation2 + $0x58] sm:$0xff]
    %v746 = vld [vmem:[#allocation2 + $0x60] sm:$0xff]
    %v747 = vld [vmem:[#allocation2 + $0x68] sm:$0xff]
    %v748 = vld [vmem:[#allocation2 + $0x70] sm:$0xff]
    %v749 = vld [vmem:[#allocation2 + $0x78] sm:$0xff]
    %v750 = vld [vmem:[#allocation2 + $0x80] sm:$0xff]
    %v751 = vld [vmem:[#allocation2 + $0x88] sm:$0xff]
    %v752 = vld [vmem:[#allocation2 + $0x90] sm:$0xff]
    %v753 = vld [vmem:[#allocation2 + $0x98] sm:$0xff]
    %v754 = vld [vmem:[#allocation2 + $0xa0] sm:$0xff]
    %v755 = vld [vmem:[#allocation2 + $0xa8] sm:$0xff]
    %v756 = vld [vmem:[#allocation2 + $0xb0] sm:$0xff]
    %v757 = vld [vmem:[#allocation2 + $0xb8] sm:$0xff]
    %v758 = vld [vmem:[#allocation2 + $0xc0] sm:$0xff]
    %v759 = vld [vmem:[#allocation2 + $0xc8] sm:$0xff]
    %v760 = vld [vmem:[#allocation2 + $0xd0] sm:$0xff]
    %v761 = vld [vmem:[#allocation2 + $0xd8] sm:$0xff]
    %v762 = vld [vmem:[#allocation2 + $0xe0] sm:$0xff]
    %v763 = vld [vmem:[#allocation2 + $0xe8] sm:$0xff]
    %v764 = vld [vmem:[#allocation2 + $0xf0] sm:$0xff]
    %v765 = vld [vmem:[#allocation2 + $0xf8] sm:$0xff]
    %v766 = vld [vmem:[#allocation2 + $0x100] sm:$0xff]
    %v767 = vld [vmem:[#allocation2 + $0x108] sm:$0xff]
    %v768 = vld [vmem:[#allocation2 + $0x110] sm:$0xff]
    %v769 = vld [vmem:[#allocation2 + $0x118] sm:$0xff]
    %v770 = vld [vmem:[#allocation2 + $0x120] sm:$0xff]
    %v771 = vld [vmem:[#allocation2 + $0x128] sm:$0xff]
    %v772 = vld [vmem:[#allocation2 + $0x130] sm:$0xff]
    %v773 = vld [vmem:[#allocation2 + $0x138] sm:$0xff]
    %v774 = vld [vmem:[#allocation2 + $0x140] sm:$0xff]
    %v775 = vld [vmem:[#allocation2 + $0x148] sm:$0xff]
    %v776 = vld [vmem:[#allocation2 + $0x150] sm:$0xff]
    %v777 = vld [vmem:[#allocation2 + $0x158] sm:$0xff]
    %v778 = vld [vmem:[#allocation2 + $0x160] sm:$0xff]
    %v779 = vld [vmem:[#allocation2 + $0x168] sm:$0xff]
    %v780 = vld [vmem:[#allocation2 + $0x170] sm:$0xff]
    %v781 = vld [vmem:[#allocation2 + $0x178] sm:$0xff]
    %v782 = vld [vmem:[#allocation8] sm:$0xf]
    %v783 = vld [vmem:[#allocation8 + $0x4] sm:$0xf]
    %v784 = vld [vmem:[#allocation8 + $0x8] sm:$0xf]
    %v785 = vld [vmem:[#allocation8 + $0xc] sm:$0xf]
    %v786 = vld [vmem:[#allocation8 + $0x10] sm:$0xf]
    %v787 = vld [vmem:[#allocation8 + $0x14] sm:$0xf]
    %v788 = vld [vmem:[#allocation8 + $0x18] sm:$0xf]
    %v789 = vld [vmem:[#allocation8 + $0x1c] sm:$0xf]
    %v790 = vld [vmem:[#allocation8 + $0x20] sm:$0xf]
    %v791 = vld [vmem:[#allocation8 + $0x24] sm:$0xf]
    %v792 = vld [vmem:[#allocation8 + $0x28] sm:$0xf]
    %v793 = vld [vmem:[#allocation8 + $0x2c] sm:$0xf]
    %v794 = vld [vmem:[#allocation8 + $0x30] sm:$0xf]
    %v795 = vld [vmem:[#allocation8 + $0x34] sm:$0xf]
    %v796 = vld [vmem:[#allocation8 + $0x38] sm:$0xf]
    %v797 = vld [vmem:[#allocation8 + $0x3c] sm:$0xf]
    %v814 = vunpack.c.l.b16 %v782
    %v815 = vunpack.c.l.b16 %v783
    %v816 = vunpack.c.l.b16 %v784
    %v817 = vunpack.c.l.b16 %v785
    %v818 = vunpack.c.l.b16 %v786
    %v819 = vunpack.c.l.b16 %v787
    %v820 = vunpack.c.l.b16 %v788
    %v821 = vunpack.c.l.b16 %v789
    %v822 = vunpack.c.l.b16 %v790
    %v823 = vunpack.c.l.b16 %v791
    %v824 = vunpack.c.l.b16 %v792
    %v825 = vunpack.c.l.b16 %v793
    %v826 = vunpack.c.l.b16 %v794
    %v827 = vunpack.c.l.b16 %v795
    %v828 = vunpack.c.l.b16 %v796
    %v829 = vunpack.c.l.b16 %v797
    %v830 = vpack.c.b16 %v815, %v814
    %v831 = vpack.c.b16 %v817, %v816
    %v832 = vpack.c.b16 %v819, %v818
    %v833 = vpack.c.b16 %v821, %v820
    %v834 = vpack.c.b16 %v823, %v822
    %v835 = vpack.c.b16 %v825, %v824
    %v836 = vpack.c.b16 %v827, %v826
    %v837 = vpack.c.b16 %v829, %v828
    %846 = vmatprep.subr.bf16.mxu0 0
    %847 = vmatpush1.bf16.msra.mxu0 %v837
    %848 = vmatprep.subr.bf16.mxu0 0
    %849 = vmatpush1.bf16.msra.mxu0 %v836
    %850 = vmatprep.subr.bf16.mxu0 0
    %851 = vmatpush1.bf16.msra.mxu0 %v835
    %852 = vmatprep.subr.bf16.mxu0 0
    %853 = vmatpush1.bf16.msra.mxu0 %v834
    %854 = vmatprep.subr.bf16.mxu0 0
    %855 = vmatpush1.bf16.msra.mxu0 %v833
    %856 = vmatprep.subr.bf16.mxu0 0
    %857 = vmatpush1.bf16.msra.mxu0 %v832
    %858 = vmatprep.subr.bf16.mxu0 0
    %859 = vmatpush1.bf16.msra.mxu0 %v831
    %860 = vmatprep.subr.bf16.mxu0 0
    %861 = vmatpush1.bf16.msra.mxu0 %v830
    %862 = vmatprep.subr.bf16.mxu0 0
    %863 = vmatpush2.bf16.msra.mxu0 0
    %864 = vmatprep.subr.bf16.mxu0 0
    %865 = vmatpush2.bf16.msra.mxu0 0
    %866 = vmatprep.subr.bf16.mxu0 0
    %867 = vmatpush2.bf16.msra.mxu0 0
    %868 = vmatprep.subr.bf16.mxu0 0
    %869 = vmatpush2.bf16.msra.mxu0 0
    %870 = vmatprep.subr.bf16.mxu0 0
    %871 = vmatpush2.bf16.msra.mxu0 0
    %872 = vmatprep.subr.bf16.mxu0 0
    %873 = vmatpush2.bf16.msra.mxu0 0
    %874 = vmatprep.subr.bf16.mxu0 0
    %875 = vmatpush2.bf16.msra.mxu0 0
    %876 = vmatprep.subr.bf16.mxu0 0
    %877 = vmatpush2.bf16.msra.mxu0 0
    %878 = vmatprep.mubr.bf16.mxu0 0
    %879 = vmatmul.mubr.bf16.gmra.mxu0 %v317
    %v880 = vpop.f32.mrf.mxu0
    %v881 = vadd.f32 0.0, %v880
    %v882 = vpop.f32.mrf.mxu0
    %v883 = vpop.f32.mrf.mxu0
    %v884 = vadd.f32 0.0, %v883
    %v885 = vpop.f32.mrf.mxu0
    %886 = vmatprep.mubr.bf16.mxu0 0
    %887 = vmatmul.mubr.bf16.gmra.mxu0 %v318
    %v888 = vpop.f32.mrf.mxu0
    %v889 = vadd.f32 0.0, %v888
    %v890 = vpop.f32.mrf.mxu0
    %v891 = vpop.f32.mrf.mxu0
    %v892 = vadd.f32 0.0, %v891
    %v893 = vpop.f32.mrf.mxu0
    %894 = vmatprep.mubr.bf16.mxu0 0
    %895 = vmatmul.mubr.bf16.gmra.mxu0 %v319
    %v896 = vpop.f32.mrf.mxu0
    %v897 = vadd.f32 0.0, %v896
    %v898 = vpop.f32.mrf.mxu0
    %v899 = vpop.f32.mrf.mxu0
    %v900 = vadd.f32 0.0, %v899
    %v901 = vpop.f32.mrf.mxu0
    %902 = vmatprep.mubr.bf16.mxu0 0
    %903 = vmatmul.mubr.bf16.gmra.mxu0 %v320
    %v904 = vpop.f32.mrf.mxu0
    %v905 = vadd.f32 0.0, %v904
    %v906 = vpop.f32.mrf.mxu0
    %v907 = vpop.f32.mrf.mxu0
    %v908 = vadd.f32 0.0, %v907
    %v909 = vpop.f32.mrf.mxu0
    %910 = vmatprep.mubr.bf16.mxu0 0
    %911 = vmatmul.mubr.bf16.gmra.mxu0 %v321
    %v912 = vpop.f32.mrf.mxu0
    %v913 = vadd.f32 0.0, %v912
    %v914 = vpop.f32.mrf.mxu0
    %v915 = vpop.f32.mrf.mxu0
    %v916 = vadd.f32 0.0, %v915
    %v917 = vpop.f32.mrf.mxu0
    %918 = vmatprep.mubr.bf16.mxu0 0
    %919 = vmatmul.mubr.bf16.gmra.mxu0 %v322
    %v920 = vpop.f32.mrf.mxu0
    %v921 = vadd.f32 0.0, %v920
    %v922 = vpop.f32.mrf.mxu0
    %v923 = vpop.f32.mrf.mxu0
    %v924 = vadd.f32 0.0, %v923
    %v925 = vpop.f32.mrf.mxu0
    %926 = vmatprep.mubr.bf16.mxu0 0
    %927 = vmatmul.mubr.bf16.gmra.mxu0 %v323
    %v928 = vpop.f32.mrf.mxu0
    %v929 = vadd.f32 0.0, %v928
    %v930 = vpop.f32.mrf.mxu0
    %v931 = vpop.f32.mrf.mxu0
    %v932 = vadd.f32 0.0, %v931
    %v933 = vpop.f32.mrf.mxu0
    %934 = vmatprep.mubr.bf16.mxu0 0
    %935 = vmatmul.mubr.bf16.gmra.mxu0 %v324
    %v936 = vpop.f32.mrf.mxu0
    %v937 = vadd.f32 0.0, %v936
    %v938 = vpop.f32.mrf.mxu0
    %v939 = vpop.f32.mrf.mxu0
    %v940 = vadd.f32 0.0, %v939
    %v941 = vpop.f32.mrf.mxu0
    %942 = vmatprep.mubr.bf16.mxu0 0
    %943 = vmatmul.mubr.bf16.gmra.mxu0 %v325
    %v944 = vpop.f32.mrf.mxu0
    %v945 = vadd.f32 0.0, %v944
    %v946 = vpop.f32.mrf.mxu0
    %v947 = vpop.f32.mrf.mxu0
    %v948 = vadd.f32 0.0, %v947
    %v949 = vpop.f32.mrf.mxu0
    %950 = vmatprep.mubr.bf16.mxu0 0
    %951 = vmatmul.mubr.bf16.gmra.mxu0 %v326
    %v952 = vpop.f32.mrf.mxu0
    %v953 = vadd.f32 0.0, %v952
    %v954 = vpop.f32.mrf.mxu0
    %v955 = vpop.f32.mrf.mxu0
    %v956 = vadd.f32 0.0, %v955
    %v957 = vpop.f32.mrf.mxu0
    %958 = vmatprep.mubr.bf16.mxu0 0
    %959 = vmatmul.mubr.bf16.gmra.mxu0 %v327
    %v960 = vpop.f32.mrf.mxu0
    %v961 = vadd.f32 0.0, %v960
    %v962 = vpop.f32.mrf.mxu0
    %v963 = vpop.f32.mrf.mxu0
    %v964 = vadd.f32 0.0, %v963
    %v965 = vpop.f32.mrf.mxu0
    %966 = vmatprep.mubr.bf16.mxu0 0
    %967 = vmatmul.mubr.bf16.gmra.mxu0 %v328
    %v968 = vpop.f32.mrf.mxu0
    %v969 = vadd.f32 0.0, %v968
    %v970 = vpop.f32.mrf.mxu0
    %v971 = vpop.f32.mrf.mxu0
    %v972 = vadd.f32 0.0, %v971
    %v973 = vpop.f32.mrf.mxu0
    %974 = vmatprep.mubr.bf16.mxu0 0
    %975 = vmatmul.mubr.bf16.gmra.mxu0 %v329
    %v976 = vpop.f32.mrf.mxu0
    %v977 = vadd.f32 0.0, %v976
    %v978 = vpop.f32.mrf.mxu0
    %v979 = vpop.f32.mrf.mxu0
    %v980 = vadd.f32 0.0, %v979
    %v981 = vpop.f32.mrf.mxu0
    %982 = vmatprep.mubr.bf16.mxu0 0
    %983 = vmatmul.mubr.bf16.gmra.mxu0 %v330
    %v984 = vpop.f32.mrf.mxu0
    %v985 = vadd.f32 0.0, %v984
    %v986 = vpop.f32.mrf.mxu0
    %v987 = vpop.f32.mrf.mxu0
    %v988 = vadd.f32 0.0, %v987
    %v989 = vpop.f32.mrf.mxu0
    %990 = vmatprep.mubr.bf16.mxu0 0
    %991 = vmatmul.mubr.bf16.gmra.mxu0 %v331
    %v992 = vpop.f32.mrf.mxu0
    %v993 = vadd.f32 0.0, %v992
    %v994 = vpop.f32.mrf.mxu0
    %v995 = vpop.f32.mrf.mxu0
    %v996 = vadd.f32 0.0, %v995
    %v997 = vpop.f32.mrf.mxu0
    %998 = vmatprep.mubr.bf16.mxu0 0
    %999 = vmatmul.mubr.bf16.gmra.mxu0 %v332
    %v1000 = vpop.f32.mrf.mxu0
    %v1001 = vadd.f32 0.0, %v1000
    %v1002 = vpop.f32.mrf.mxu0
    %v1003 = vpop.f32.mrf.mxu0
    %v1004 = vadd.f32 0.0, %v1003
    %v1005 = vpop.f32.mrf.mxu0
    %1006 = vmatprep.mubr.bf16.mxu0 0
    %1007 = vmatmul.mubr.bf16.gmra.mxu0 %v333
    %v1008 = vpop.f32.mrf.mxu0
    %v1009 = vadd.f32 0.0, %v1008
    %v1010 = vpop.f32.mrf.mxu0
    %v1011 = vpop.f32.mrf.mxu0
    %v1012 = vadd.f32 0.0, %v1011
    %v1013 = vpop.f32.mrf.mxu0
    %1014 = vmatprep.mubr.bf16.mxu0 0
    %1015 = vmatmul.mubr.bf16.gmra.mxu0 %v334
    %v1016 = vpop.f32.mrf.mxu0
    %v1017 = vadd.f32 0.0, %v1016
    %v1018 = vpop.f32.mrf.mxu0
    %v1019 = vpop.f32.mrf.mxu0
    %v1020 = vadd.f32 0.0, %v1019
    %v1021 = vpop.f32.mrf.mxu0
    %1022 = vmatprep.mubr.bf16.mxu0 0
    %1023 = vmatmul.mubr.bf16.gmra.mxu0 %v335
    %v1024 = vpop.f32.mrf.mxu0
    %v1025 = vadd.f32 0.0, %v1024
    %v1026 = vpop.f32.mrf.mxu0
    %v1027 = vpop.f32.mrf.mxu0
    %v1028 = vadd.f32 0.0, %v1027
    %v1029 = vpop.f32.mrf.mxu0
    %1030 = vmatprep.mubr.bf16.mxu0 0
    %1031 = vmatmul.mubr.bf16.gmra.mxu0 %v336
    %v1032 = vpop.f32.mrf.mxu0
    %v1033 = vadd.f32 0.0, %v1032
    %v1034 = vpop.f32.mrf.mxu0
    %v1035 = vpop.f32.mrf.mxu0
    %v1036 = vadd.f32 0.0, %v1035
    %v1037 = vpop.f32.mrf.mxu0
    %1038 = vmatprep.mubr.bf16.mxu0 0
    %1039 = vmatmul.mubr.bf16.gmra.mxu0 %v337
    %v1040 = vpop.f32.mrf.mxu0
    %v1041 = vadd.f32 0.0, %v1040
    %v1042 = vpop.f32.mrf.mxu0
    %v1043 = vpop.f32.mrf.mxu0
    %v1044 = vadd.f32 0.0, %v1043
    %v1045 = vpop.f32.mrf.mxu0
    %1046 = vmatprep.mubr.bf16.mxu0 0
    %1047 = vmatmul.mubr.bf16.gmra.mxu0 %v338
    %v1048 = vpop.f32.mrf.mxu0
    %v1049 = vadd.f32 0.0, %v1048
    %v1050 = vpop.f32.mrf.mxu0
    %v1051 = vpop.f32.mrf.mxu0
    %v1052 = vadd.f32 0.0, %v1051
    %v1053 = vpop.f32.mrf.mxu0
    %1054 = vmatprep.mubr.bf16.mxu0 0
    %1055 = vmatmul.mubr.bf16.gmra.mxu0 %v339
    %v1056 = vpop.f32.mrf.mxu0
    %v1057 = vadd.f32 0.0, %v1056
    %v1058 = vpop.f32.mrf.mxu0
    %v1059 = vpop.f32.mrf.mxu0
    %v1060 = vadd.f32 0.0, %v1059
    %v1061 = vpop.f32.mrf.mxu0
    %1062 = vmatprep.mubr.bf16.mxu0 0
    %1063 = vmatmul.mubr.bf16.gmra.mxu0 %v340
    %v1064 = vpop.f32.mrf.mxu0
    %v1065 = vadd.f32 0.0, %v1064
    %v1066 = vpop.f32.mrf.mxu0
    %v1067 = vpop.f32.mrf.mxu0
    %v1068 = vadd.f32 0.0, %v1067
    %v1069 = vpop.f32.mrf.mxu0
    %1070 = vdwg.mxu0
    %v1071 = vadd.f32 %v734, %v881
    %v1072 = vadd.f32 %v735, %v884
    %v1073 = vadd.f32 %v736, %v889
    %v1074 = vadd.f32 %v737, %v892
    %v1075 = vadd.f32 %v738, %v897
    %v1076 = vadd.f32 %v739, %v900
    %v1077 = vadd.f32 %v740, %v905
    %v1078 = vadd.f32 %v741, %v908
    %v1079 = vadd.f32 %v742, %v913
    %v1080 = vadd.f32 %v743, %v916
    %v1081 = vadd.f32 %v744, %v921
    %v1082 = vadd.f32 %v745, %v924
    %v1083 = vadd.f32 %v746, %v929
    %v1084 = vadd.f32 %v747, %v932
    %v1085 = vadd.f32 %v748, %v937
    %v1086 = vadd.f32 %v749, %v940
    %v1087 = vadd.f32 %v750, %v945
    %v1088 = vadd.f32 %v751, %v948
    %v1089 = vadd.f32 %v752, %v953
    %v1090 = vadd.f32 %v753, %v956
    %v1091 = vadd.f32 %v754, %v961
    %v1092 = vadd.f32 %v755, %v964
    %v1093 = vadd.f32 %v756, %v969
    %v1094 = vadd.f32 %v757, %v972
    %v1095 = vadd.f32 %v758, %v977
    %v1096 = vadd.f32 %v759, %v980
    %v1097 = vadd.f32 %v760, %v985
    %v1098 = vadd.f32 %v761, %v988
    %v1099 = vadd.f32 %v762, %v993
    %v1100 = vadd.f32 %v763, %v996
    %v1101 = vadd.f32 %v764, %v1001
    %v1102 = vadd.f32 %v765, %v1004
    %v1103 = vadd.f32 %v766, %v1009
    %v1104 = vadd.f32 %v767, %v1012
    %v1105 = vadd.f32 %v768, %v1017
    %v1106 = vadd.f32 %v769, %v1020
    %v1107 = vadd.f32 %v770, %v1025
    %v1108 = vadd.f32 %v771, %v1028
    %v1109 = vadd.f32 %v772, %v1033
    %v1110 = vadd.f32 %v773, %v1036
    %v1111 = vadd.f32 %v774, %v1041
    %v1112 = vadd.f32 %v775, %v1044
    %v1113 = vadd.f32 %v776, %v1049
    %v1114 = vadd.f32 %v777, %v1052
    %v1115 = vadd.f32 %v778, %v1057
    %v1116 = vadd.f32 %v779, %v1060
    %v1117 = vadd.f32 %v780, %v1065
    %v1118 = vadd.f32 %v781, %v1068
    %1119 = vst [vmem:[#allocation2] sm:$0xff] %v1071
    %1120 = vst [vmem:[#allocation2 + $0x8] sm:$0xff] %v1072
    %1121 = vst [vmem:[#allocation2 + $0x10] sm:$0xff] %v1073
    %1122 = vst [vmem:[#allocation2 + $0x18] sm:$0xff] %v1074
    %1123 = vst [vmem:[#allocation2 + $0x20] sm:$0xff] %v1075
    %1124 = vst [vmem:[#allocation2 + $0x28] sm:$0xff] %v1076
    %1125 = vst [vmem:[#allocation2 + $0x30] sm:$0xff] %v1077
    %1126 = vst [vmem:[#allocation2 + $0x38] sm:$0xff] %v1078
    %1127 = vst [vmem:[#allocation2 + $0x40] sm:$0xff] %v1079
    %1128 = vst [vmem:[#allocation2 + $0x48] sm:$0xff] %v1080
    %1129 = vst [vmem:[#allocation2 + $0x50] sm:$0xff] %v1081
    %1130 = vst [vmem:[#allocation2 + $0x58] sm:$0xff] %v1082
    %1131 = vst [vmem:[#allocation2 + $0x60] sm:$0xff] %v1083
    %1132 = vst [vmem:[#allocation2 + $0x68] sm:$0xff] %v1084
    %1133 = vst [vmem:[#allocation2 + $0x70] sm:$0xff] %v1085
    %1134 = vst [vmem:[#allocation2 + $0x78] sm:$0xff] %v1086
    %1135 = vst [vmem:[#allocation2 + $0x80] sm:$0xff] %v1087
    %1136 = vst [vmem:[#allocation2 + $0x88] sm:$0xff] %v1088
    %1137 = vst [vmem:[#allocation2 + $0x90] sm:$0xff] %v1089
    %1138 = vst [vmem:[#allocation2 + $0x98] sm:$0xff] %v1090
    %1139 = vst [vmem:[#allocation2 + $0xa0] sm:$0xff] %v1091
    %1140 = vst [vmem:[#allocation2 + $0xa8] sm:$0xff] %v1092
    %1141 = vst [vmem:[#allocation2 + $0xb0] sm:$0xff] %v1093
    %1142 = vst [vmem:[#allocation2 + $0xb8] sm:$0xff] %v1094
    %1143 = vst [vmem:[#allocation2 + $0xc0] sm:$0xff] %v1095
    %1144 = vst [vmem:[#allocation2 + $0xc8] sm:$0xff] %v1096
    %1145 = vst [vmem:[#allocation2 + $0xd0] sm:$0xff] %v1097
    %1146 = vst [vmem:[#allocation2 + $0xd8] sm:$0xff] %v1098
    %1147 = vst [vmem:[#allocation2 + $0xe0] sm:$0xff] %v1099
    %1148 = vst [vmem:[#allocation2 + $0xe8] sm:$0xff] %v1100
    %1149 = vst [vmem:[#allocation2 + $0xf0] sm:$0xff] %v1101
    %1150 = vst [vmem:[#allocation2 + $0xf8] sm:$0xff] %v1102
    %1151 = vst [vmem:[#allocation2 + $0x100] sm:$0xff] %v1103
    %1152 = vst [vmem:[#allocation2 + $0x108] sm:$0xff] %v1104
    %1153 = vst [vmem:[#allocation2 + $0x110] sm:$0xff] %v1105
    %1154 = vst [vmem:[#allocation2 + $0x118] sm:$0xff] %v1106
    %1155 = vst [vmem:[#allocation2 + $0x120] sm:$0xff] %v1107
    %1156 = vst [vmem:[#allocation2 + $0x128] sm:$0xff] %v1108
    %1157 = vst [vmem:[#allocation2 + $0x130] sm:$0xff] %v1109
    %1158 = vst [vmem:[#allocation2 + $0x138] sm:$0xff] %v1110
    %1159 = vst [vmem:[#allocation2 + $0x140] sm:$0xff] %v1111
    %1160 = vst [vmem:[#allocation2 + $0x148] sm:$0xff] %v1112
    %1161 = vst [vmem:[#allocation2 + $0x150] sm:$0xff] %v1113
    %1162 = vst [vmem:[#allocation2 + $0x158] sm:$0xff] %v1114
    %1163 = vst [vmem:[#allocation2 + $0x160] sm:$0xff] %v1115
    %1164 = vst [vmem:[#allocation2 + $0x168] sm:$0xff] %v1116
    %1165 = vst [vmem:[#allocation2 + $0x170] sm:$0xff] %v1117
    %1166 = vst [vmem:[#allocation2 + $0x178] sm:$0xff] %v1118
    // Predicated region
    $region30: #{tpu_custom_call.1} parent=1 // pred_check
      %p1167 = pneg %p57
    $region31: #{tpu_custom_call.1} parent=1 // pred_check_branch
      %1169 = sbr.rel (%p1167) target = $region33
    $region32: #{tpu_custom_call.1} parent=1 // pred_region
      %v1170 = vld [vmem:[#allocation2] sm:$0xff]
      %v1171 = vld [vmem:[#allocation2 + $0x8] sm:$0xff]
      %v1172 = vld [vmem:[#allocation2 + $0x10] sm:$0xff]
      %v1173 = vld [vmem:[#allocation2 + $0x18] sm:$0xff]
      %v1174 = vld [vmem:[#allocation2 + $0x20] sm:$0xff]
      %v1175 = vld [vmem:[#allocation2 + $0x28] sm:$0xff]
      %v1176 = vld [vmem:[#allocation2 + $0x30] sm:$0xff]
      %v1177 = vld [vmem:[#allocation2 + $0x38] sm:$0xff]
      %v1178 = vld [vmem:[#allocation2 + $0x40] sm:$0xff]
      %v1179 = vld [vmem:[#allocation2 + $0x48] sm:$0xff]
      %v1180 = vld [vmem:[#allocation2 + $0x50] sm:$0xff]
      %v1181 = vld [vmem:[#allocation2 + $0x58] sm:$0xff]
      %v1182 = vld [vmem:[#allocation2 + $0x60] sm:$0xff]
      %v1183 = vld [vmem:[#allocation2 + $0x68] sm:$0xff]
      %v1184 = vld [vmem:[#allocation2 + $0x70] sm:$0xff]
      %v1185 = vld [vmem:[#allocation2 + $0x78] sm:$0xff]
      %v1186 = vld [vmem:[#allocation2 + $0x80] sm:$0xff]
      %v1187 = vld [vmem:[#allocation2 + $0x88] sm:$0xff]
      %v1188 = vld [vmem:[#allocation2 + $0x90] sm:$0xff]
      %v1189 = vld [vmem:[#allocation2 + $0x98] sm:$0xff]
      %v1190 = vld [vmem:[#allocation2 + $0xa0] sm:$0xff]
      %v1191 = vld [vmem:[#allocation2 + $0xa8] sm:$0xff]
      %v1192 = vld [vmem:[#allocation2 + $0xb0] sm:$0xff]
      %v1193 = vld [vmem:[#allocation2 + $0xb8] sm:$0xff]
      %v1194 = vld [vmem:[#allocation2 + $0xc0] sm:$0xff]
      %v1195 = vld [vmem:[#allocation2 + $0xc8] sm:$0xff]
      %v1196 = vld [vmem:[#allocation2 + $0xd0] sm:$0xff]
      %v1197 = vld [vmem:[#allocation2 + $0xd8] sm:$0xff]
      %v1198 = vld [vmem:[#allocation2 + $0xe0] sm:$0xff]
      %v1199 = vld [vmem:[#allocation2 + $0xe8] sm:$0xff]
      %v1200 = vld [vmem:[#allocation2 + $0xf0] sm:$0xff]
      %v1201 = vld [vmem:[#allocation2 + $0xf8] sm:$0xff]
      %v1202 = vld [vmem:[#allocation2 + $0x100] sm:$0xff]
      %v1203 = vld [vmem:[#allocation2 + $0x108] sm:$0xff]
      %v1204 = vld [vmem:[#allocation2 + $0x110] sm:$0xff]
      %v1205 = vld [vmem:[#allocation2 + $0x118] sm:$0xff]
      %v1206 = vld [vmem:[#allocation2 + $0x120] sm:$0xff]
      %v1207 = vld [vmem:[#allocation2 + $0x128] sm:$0xff]
      %v1208 = vld [vmem:[#allocation2 + $0x130] sm:$0xff]
      %v1209 = vld [vmem:[#allocation2 + $0x138] sm:$0xff]
      %v1210 = vld [vmem:[#allocation2 + $0x140] sm:$0xff]
      %v1211 = vld [vmem:[#allocation2 + $0x148] sm:$0xff]
      %v1212 = vld [vmem:[#allocation2 + $0x150] sm:$0xff]
      %v1213 = vld [vmem:[#allocation2 + $0x158] sm:$0xff]
      %v1214 = vld [vmem:[#allocation2 + $0x160] sm:$0xff]
      %v1215 = vld [vmem:[#allocation2 + $0x168] sm:$0xff]
      %v1216 = vld [vmem:[#allocation2 + $0x170] sm:$0xff]
      %v1217 = vld [vmem:[#allocation2 + $0x178] sm:$0xff]
      %v1218 = vmul.f32 %v1170, %v1186
      %v1219 = vmul.f32 %v1171, %v1187
      %v1220 = vmul.f32 %v1172, %v1188
      %v1221 = vmul.f32 %v1173, %v1189
      %v1222 = vmul.f32 %v1174, %v1190
      %v1223 = vmul.f32 %v1175, %v1191
      %v1224 = vmul.f32 %v1176, %v1192
      %v1225 = vmul.f32 %v1177, %v1193
      %v1226 = vmul.f32 %v1178, %v1194
      %v1227 = vmul.f32 %v1179, %v1195
      %v1228 = vmul.f32 %v1180, %v1196
      %v1229 = vmul.f32 %v1181, %v1197
      %v1230 = vmul.f32 %v1182, %v1198
      %v1231 = vmul.f32 %v1183, %v1199
      %v1232 = vmul.f32 %v1184, %v1200
      %v1233 = vmul.f32 %v1185, %v1201
      %1234 = vadd.xlane.f32.xlu0 %v1218
      %v1235 = vpop.xlane.xlu0 %1234
      %1236 = vadd.xlane.f32.xlu0 %v1219
      %v1237 = vpop.xlane.xlu0 %1236
      %1238 = vadd.xlane.f32.xlu0 %v1220
      %v1239 = vpop.xlane.xlu0 %1238
      %1240 = vadd.xlane.f32.xlu0 %v1221
      %v1241 = vpop.xlane.xlu0 %1240
      %1242 = vadd.xlane.f32.xlu0 %v1222
      %v1243 = vpop.xlane.xlu0 %1242
      %1244 = vadd.xlane.f32.xlu0 %v1223
      %v1245 = vpop.xlane.xlu0 %1244
      %1246 = vadd.xlane.f32.xlu0 %v1224
      %v1247 = vpop.xlane.xlu0 %1246
      %1248 = vadd.xlane.f32.xlu0 %v1225
      %v1249 = vpop.xlane.xlu0 %1248
      %1250 = vadd.xlane.f32.xlu0 %v1226
      %v1251 = vpop.xlane.xlu0 %1250
      %1252 = vadd.xlane.f32.xlu0 %v1227
      %v1253 = vpop.xlane.xlu0 %1252
      %1254 = vadd.xlane.f32.xlu0 %v1228
      %v1255 = vpop.xlane.xlu0 %1254
      %1256 = vadd.xlane.f32.xlu0 %v1229
      %v1257 = vpop.xlane.xlu0 %1256
      %1258 = vadd.xlane.f32.xlu0 %v1230
      %v1259 = vpop.xlane.xlu0 %1258
      %1260 = vadd.xlane.f32.xlu0 %v1231
      %v1261 = vpop.xlane.xlu0 %1260
      %1262 = vadd.xlane.f32.xlu0 %v1232
      %v1263 = vpop.xlane.xlu0 %1262
      %1264 = vadd.xlane.f32.xlu0 %v1233
      %v1265 = vpop.xlane.xlu0 %1264
      %v1266 = vmul.f32 %v1170, %v1202
      %v1267 = vmul.f32 %v1171, %v1203
      %v1268 = vmul.f32 %v1172, %v1204
      %v1269 = vmul.f32 %v1173, %v1205
      %v1270 = vmul.f32 %v1174, %v1206
      %v1271 = vmul.f32 %v1175, %v1207
      %v1272 = vmul.f32 %v1176, %v1208
      %v1273 = vmul.f32 %v1177, %v1209
      %v1274 = vmul.f32 %v1178, %v1210
      %v1275 = vmul.f32 %v1179, %v1211
      %v1276 = vmul.f32 %v1180, %v1212
      %v1277 = vmul.f32 %v1181, %v1213
      %v1278 = vmul.f32 %v1182, %v1214
      %v1279 = vmul.f32 %v1183, %v1215
      %v1280 = vmul.f32 %v1184, %v1216
      %v1281 = vmul.f32 %v1185, %v1217
      %1282 = vadd.xlane.f32.xlu0 %v1266
      %v1283 = vpop.xlane.xlu0 %1282
      %1284 = vadd.xlane.f32.xlu0 %v1267
      %v1285 = vpop.xlane.xlu0 %1284
      %1286 = vadd.xlane.f32.xlu0 %v1268
      %v1287 = vpop.xlane.xlu0 %1286
      %1288 = vadd.xlane.f32.xlu0 %v1269
      %v1289 = vpop.xlane.xlu0 %1288
      %1290 = vadd.xlane.f32.xlu0 %v1270
      %v1291 = vpop.xlane.xlu0 %1290
      %1292 = vadd.xlane.f32.xlu0 %v1271
      %v1293 = vpop.xlane.xlu0 %1292
      %1294 = vadd.xlane.f32.xlu0 %v1272
      %v1295 = vpop.xlane.xlu0 %1294
      %1296 = vadd.xlane.f32.xlu0 %v1273
      %v1297 = vpop.xlane.xlu0 %1296
      %1298 = vadd.xlane.f32.xlu0 %v1274
      %v1299 = vpop.xlane.xlu0 %1298
      %1300 = vadd.xlane.f32.xlu0 %v1275
      %v1301 = vpop.xlane.xlu0 %1300
      %1302 = vadd.xlane.f32.xlu0 %v1276
      %v1303 = vpop.xlane.xlu0 %1302
      %1304 = vadd.xlane.f32.xlu0 %v1277
      %v1305 = vpop.xlane.xlu0 %1304
      %1306 = vadd.xlane.f32.xlu0 %v1278
      %v1307 = vpop.xlane.xlu0 %1306
      %1308 = vadd.xlane.f32.xlu0 %v1279
      %v1309 = vpop.xlane.xlu0 %1308
      %1310 = vadd.xlane.f32.xlu0 %v1280
      %v1311 = vpop.xlane.xlu0 %1310
      %1312 = vadd.xlane.f32.xlu0 %v1281
      %v1313 = vpop.xlane.xlu0 %1312
      %v1314 = vmul.f32 %v1186, %v1186
      %v1315 = vmul.f32 %v1187, %v1187
      %v1316 = vmul.f32 %v1188, %v1188
      %v1317 = vmul.f32 %v1189, %v1189
      %v1318 = vmul.f32 %v1190, %v1190
      %v1319 = vmul.f32 %v1191, %v1191
      %v1320 = vmul.f32 %v1192, %v1192
      %v1321 = vmul.f32 %v1193, %v1193
      %v1322 = vmul.f32 %v1194, %v1194
      %v1323 = vmul.f32 %v1195, %v1195
      %v1324 = vmul.f32 %v1196, %v1196
      %v1325 = vmul.f32 %v1197, %v1197
      %v1326 = vmul.f32 %v1198, %v1198
      %v1327 = vmul.f32 %v1199, %v1199
      %v1328 = vmul.f32 %v1200, %v1200
      %v1329 = vmul.f32 %v1201, %v1201
      %1330 = vadd.xlane.f32.xlu0 %v1314
      %v1331 = vpop.xlane.xlu0 %1330
      %1332 = vadd.xlane.f32.xlu0 %v1315
      %v1333 = vpop.xlane.xlu0 %1332
      %1334 = vadd.xlane.f32.xlu0 %v1316
      %v1335 = vpop.xlane.xlu0 %1334
      %1336 = vadd.xlane.f32.xlu0 %v1317
      %v1337 = vpop.xlane.xlu0 %1336
      %1338 = vadd.xlane.f32.xlu0 %v1318
      %v1339 = vpop.xlane.xlu0 %1338
      %1340 = vadd.xlane.f32.xlu0 %v1319
      %v1341 = vpop.xlane.xlu0 %1340
      %1342 = vadd.xlane.f32.xlu0 %v1320
      %v1343 = vpop.xlane.xlu0 %1342
      %1344 = vadd.xlane.f32.xlu0 %v1321
      %v1345 = vpop.xlane.xlu0 %1344
      %1346 = vadd.xlane.f32.xlu0 %v1322
      %v1347 = vpop.xlane.xlu0 %1346
      %1348 = vadd.xlane.f32.xlu0 %v1323
      %v1349 = vpop.xlane.xlu0 %1348
      %1350 = vadd.xlane.f32.xlu0 %v1324
      %v1351 = vpop.xlane.xlu0 %1350
      %1352 = vadd.xlane.f32.xlu0 %v1325
      %v1353 = vpop.xlane.xlu0 %1352
      %1354 = vadd.xlane.f32.xlu0 %v1326
      %v1355 = vpop.xlane.xlu0 %1354
      %1356 = vadd.xlane.f32.xlu0 %v1327
      %v1357 = vpop.xlane.xlu0 %1356
      %1358 = vadd.xlane.f32.xlu0 %v1328
      %v1359 = vpop.xlane.xlu0 %1358
      %1360 = vadd.xlane.f32.xlu0 %v1329
      %v1361 = vpop.xlane.xlu0 %1360
      %v1362 = vrsqrt.pop %v1331
      %v1363 = vmul.f32 %v1331, %v1362
      %vm1364 = vcmp.eq.f32.partialorder %v1331, inf
      %v1365 = vsel %vm1364, %v1331, %v1363
      %vm1366 = vcmp.eq.f32.partialorder %v1331, 0.0
      %v1367 = vand.u32 %v1331, 2147483648
      %v1368 = vsel %vm1366, %v1367, %v1365
      %v1369 = vrsqrt.pop %v1333
      %v1370 = vmul.f32 %v1333, %v1369
      %vm1371 = vcmp.eq.f32.partialorder %v1333, inf
      %v1372 = vsel %vm1371, %v1333, %v1370
      %vm1373 = vcmp.eq.f32.partialorder %v1333, 0.0
      %v1374 = vand.u32 %v1333, 2147483648
      %v1375 = vsel %vm1373, %v1374, %v1372
      %v1376 = vrsqrt.pop %v1335
      %v1377 = vmul.f32 %v1335, %v1376
      %vm1378 = vcmp.eq.f32.partialorder %v1335, inf
      %v1379 = vsel %vm1378, %v1335, %v1377
      %vm1380 = vcmp.eq.f32.partialorder %v1335, 0.0
      %v1381 = vand.u32 %v1335, 2147483648
      %v1382 = vsel %vm1380, %v1381, %v1379
      %v1383 = vrsqrt.pop %v1337
      %v1384 = vmul.f32 %v1337, %v1383
      %vm1385 = vcmp.eq.f32.partialorder %v1337, inf
      %v1386 = vsel %vm1385, %v1337, %v1384
      %vm1387 = vcmp.eq.f32.partialorder %v1337, 0.0
      %v1388 = vand.u32 %v1337, 2147483648
      %v1389 = vsel %vm1387, %v1388, %v1386
      %v1390 = vrsqrt.pop %v1339
      %v1391 = vmul.f32 %v1339, %v1390
      %vm1392 = vcmp.eq.f32.partialorder %v1339, inf
      %v1393 = vsel %vm1392, %v1339, %v1391
      %vm1394 = vcmp.eq.f32.partialorder %v1339, 0.0
      %v1395 = vand.u32 %v1339, 2147483648
      %v1396 = vsel %vm1394, %v1395, %v1393
      %v1397 = vrsqrt.pop %v1341
      %v1398 = vmul.f32 %v1341, %v1397
      %vm1399 = vcmp.eq.f32.partialorder %v1341, inf
      %v1400 = vsel %vm1399, %v1341, %v1398
      %vm1401 = vcmp.eq.f32.partialorder %v1341, 0.0
      %v1402 = vand.u32 %v1341, 2147483648
      %v1403 = vsel %vm1401, %v1402, %v1400
      %v1404 = vrsqrt.pop %v1343
      %v1405 = vmul.f32 %v1343, %v1404
      %vm1406 = vcmp.eq.f32.partialorder %v1343, inf
      %v1407 = vsel %vm1406, %v1343, %v1405
      %vm1408 = vcmp.eq.f32.partialorder %v1343, 0.0
      %v1409 = vand.u32 %v1343, 2147483648
      %v1410 = vsel %vm1408, %v1409, %v1407
      %v1411 = vrsqrt.pop %v1345
      %v1412 = vmul.f32 %v1345, %v1411
      %vm1413 = vcmp.eq.f32.partialorder %v1345, inf
      %v1414 = vsel %vm1413, %v1345, %v1412
      %vm1415 = vcmp.eq.f32.partialorder %v1345, 0.0
      %v1416 = vand.u32 %v1345, 2147483648
      %v1417 = vsel %vm1415, %v1416, %v1414
      %v1418 = vrsqrt.pop %v1347
      %v1419 = vmul.f32 %v1347, %v1418
      %vm1420 = vcmp.eq.f32.partialorder %v1347, inf
      %v1421 = vsel %vm1420, %v1347, %v1419
      %vm1422 = vcmp.eq.f32.partialorder %v1347, 0.0
      %v1423 = vand.u32 %v1347, 2147483648
      %v1424 = vsel %vm1422, %v1423, %v1421
      %v1425 = vrsqrt.pop %v1349
      %v1426 = vmul.f32 %v1349, %v1425
      %vm1427 = vcmp.eq.f32.partialorder %v1349, inf
      %v1428 = vsel %vm1427, %v1349, %v1426
      %vm1429 = vcmp.eq.f32.partialorder %v1349, 0.0
      %v1430 = vand.u32 %v1349, 2147483648
      %v1431 = vsel %vm1429, %v1430, %v1428
      %v1432 = vrsqrt.pop %v1351
      %v1433 = vmul.f32 %v1351, %v1432
      %vm1434 = vcmp.eq.f32.partialorder %v1351, inf
      %v1435 = vsel %vm1434, %v1351, %v1433
      %vm1436 = vcmp.eq.f32.partialorder %v1351, 0.0
      %v1437 = vand.u32 %v1351, 2147483648
      %v1438 = vsel %vm1436, %v1437, %v1435
      %v1439 = vrsqrt.pop %v1353
      %v1440 = vmul.f32 %v1353, %v1439
      %vm1441 = vcmp.eq.f32.partialorder %v1353, inf
      %v1442 = vsel %vm1441, %v1353, %v1440
      %vm1443 = vcmp.eq.f32.partialorder %v1353, 0.0
      %v1444 = vand.u32 %v1353, 2147483648
      %v1445 = vsel %vm1443, %v1444, %v1442
      %v1446 = vrsqrt.pop %v1355
      %v1447 = vmul.f32 %v1355, %v1446
      %vm1448 = vcmp.eq.f32.partialorder %v1355, inf
      %v1449 = vsel %vm1448, %v1355, %v1447
      %vm1450 = vcmp.eq.f32.partialorder %v1355, 0.0
      %v1451 = vand.u32 %v1355, 2147483648
      %v1452 = vsel %vm1450, %v1451, %v1449
      %v1453 = vrsqrt.pop %v1357
      %v1454 = vmul.f32 %v1357, %v1453
      %vm1455 = vcmp.eq.f32.partialorder %v1357, inf
      %v1456 = vsel %vm1455, %v1357, %v1454
      %vm1457 = vcmp.eq.f32.partialorder %v1357, 0.0
      %v1458 = vand.u32 %v1357, 2147483648
      %v1459 = vsel %vm1457, %v1458, %v1456
      %v1460 = vrsqrt.pop %v1359
      %v1461 = vmul.f32 %v1359, %v1460
      %vm1462 = vcmp.eq.f32.partialorder %v1359, inf
      %v1463 = vsel %vm1462, %v1359, %v1461
      %vm1464 = vcmp.eq.f32.partialorder %v1359, 0.0
      %v1465 = vand.u32 %v1359, 2147483648
      %v1466 = vsel %vm1464, %v1465, %v1463
      %v1467 = vrsqrt.pop %v1361
      %v1468 = vmul.f32 %v1361, %v1467
      %vm1469 = vcmp.eq.f32.partialorder %v1361, inf
      %v1470 = vsel %vm1469, %v1361, %v1468
      %vm1471 = vcmp.eq.f32.partialorder %v1361, 0.0
      %v1472 = vand.u32 %v1361, 2147483648
      %v1473 = vsel %vm1471, %v1472, %v1470
      %v1474 = vmax.f32 %v1368, 1e-08
      %v1475 = vmax.f32 %v1375, 1e-08
      %v1476 = vmax.f32 %v1382, 1e-08
      %v1477 = vmax.f32 %v1389, 1e-08
      %v1478 = vmax.f32 %v1396, 1e-08
      %v1479 = vmax.f32 %v1403, 1e-08
      %v1480 = vmax.f32 %v1410, 1e-08
      %v1481 = vmax.f32 %v1417, 1e-08
      %v1482 = vmax.f32 %v1424, 1e-08
      %v1483 = vmax.f32 %v1431, 1e-08
      %v1484 = vmax.f32 %v1438, 1e-08
      %v1485 = vmax.f32 %v1445, 1e-08
      %v1486 = vmax.f32 %v1452, 1e-08
      %v1487 = vmax.f32 %v1459, 1e-08
      %v1488 = vmax.f32 %v1466, 1e-08
      %v1489 = vmax.f32 %v1473, 1e-08
      %v1490 = vmul.f32 %v1202, %v1202
      %v1491 = vmul.f32 %v1203, %v1203
      %v1492 = vmul.f32 %v1204, %v1204
      %v1493 = vmul.f32 %v1205, %v1205
      %v1494 = vmul.f32 %v1206, %v1206
      %v1495 = vmul.f32 %v1207, %v1207
      %v1496 = vmul.f32 %v1208, %v1208
      %v1497 = vmul.f32 %v1209, %v1209
      %v1498 = vmul.f32 %v1210, %v1210
      %v1499 = vmul.f32 %v1211, %v1211
      %v1500 = vmul.f32 %v1212, %v1212
      %v1501 = vmul.f32 %v1213, %v1213
      %v1502 = vmul.f32 %v1214, %v1214
      %v1503 = vmul.f32 %v1215, %v1215
      %v1504 = vmul.f32 %v1216, %v1216
      %v1505 = vmul.f32 %v1217, %v1217
      %1506 = vadd.xlane.f32.xlu0 %v1490
      %v1507 = vpop.xlane.xlu0 %1506
      %1508 = vadd.xlane.f32.xlu0 %v1491
      %v1509 = vpop.xlane.xlu0 %1508
      %1510 = vadd.xlane.f32.xlu0 %v1492
      %v1511 = vpop.xlane.xlu0 %1510
      %1512 = vadd.xlane.f32.xlu0 %v1493
      %v1513 = vpop.xlane.xlu0 %1512
      %1514 = vadd.xlane.f32.xlu0 %v1494
      %v1515 = vpop.xlane.xlu0 %1514
      %1516 = vadd.xlane.f32.xlu0 %v1495
      %v1517 = vpop.xlane.xlu0 %1516
      %1518 = vadd.xlane.f32.xlu0 %v1496
      %v1519 = vpop.xlane.xlu0 %1518
      %1520 = vadd.xlane.f32.xlu0 %v1497
      %v1521 = vpop.xlane.xlu0 %1520
      %1522 = vadd.xlane.f32.xlu0 %v1498
      %v1523 = vpop.xlane.xlu0 %1522
      %1524 = vadd.xlane.f32.xlu0 %v1499
      %v1525 = vpop.xlane.xlu0 %1524
      %1526 = vadd.xlane.f32.xlu0 %v1500
      %v1527 = vpop.xlane.xlu0 %1526
      %1528 = vadd.xlane.f32.xlu0 %v1501
      %v1529 = vpop.xlane.xlu0 %1528
      %1530 = vadd.xlane.f32.xlu0 %v1502
      %v1531 = vpop.xlane.xlu0 %1530
      %1532 = vadd.xlane.f32.xlu0 %v1503
      %v1533 = vpop.xlane.xlu0 %1532
      %1534 = vadd.xlane.f32.xlu0 %v1504
      %v1535 = vpop.xlane.xlu0 %1534
      %1536 = vadd.xlane.f32.xlu0 %v1505
      %v1537 = vpop.xlane.xlu0 %1536
      %v1538 = vrsqrt.pop %v1507
      %v1539 = vmul.f32 %v1507, %v1538
      %vm1540 = vcmp.eq.f32.partialorder %v1507, inf
      %v1541 = vsel %vm1540, %v1507, %v1539
      %vm1542 = vcmp.eq.f32.partialorder %v1507, 0.0
      %v1543 = vand.u32 %v1507, 2147483648
      %v1544 = vsel %vm1542, %v1543, %v1541
      %v1545 = vrsqrt.pop %v1509
      %v1546 = vmul.f32 %v1509, %v1545
      %vm1547 = vcmp.eq.f32.partialorder %v1509, inf
      %v1548 = vsel %vm1547, %v1509, %v1546
      %vm1549 = vcmp.eq.f32.partialorder %v1509, 0.0
      %v1550 = vand.u32 %v1509, 2147483648
      %v1551 = vsel %vm1549, %v1550, %v1548
      %v1552 = vrsqrt.pop %v1511
      %v1553 = vmul.f32 %v1511, %v1552
      %vm1554 = vcmp.eq.f32.partialorder %v1511, inf
      %v1555 = vsel %vm1554, %v1511, %v1553
      %vm1556 = vcmp.eq.f32.partialorder %v1511, 0.0
      %v1557 = vand.u32 %v1511, 2147483648
      %v1558 = vsel %vm1556, %v1557, %v1555
      %v1559 = vrsqrt.pop %v1513
      %v1560 = vmul.f32 %v1513, %v1559
      %vm1561 = vcmp.eq.f32.partialorder %v1513, inf
      %v1562 = vsel %vm1561, %v1513, %v1560
      %vm1563 = vcmp.eq.f32.partialorder %v1513, 0.0
      %v1564 = vand.u32 %v1513, 2147483648
      %v1565 = vsel %vm1563, %v1564, %v1562
      %v1566 = vrsqrt.pop %v1515
      %v1567 = vmul.f32 %v1515, %v1566
      %vm1568 = vcmp.eq.f32.partialorder %v1515, inf
      %v1569 = vsel %vm1568, %v1515, %v1567
      %vm1570 = vcmp.eq.f32.partialorder %v1515, 0.0
      %v1571 = vand.u32 %v1515, 2147483648
      %v1572 = vsel %vm1570, %v1571, %v1569
      %v1573 = vrsqrt.pop %v1517
      %v1574 = vmul.f32 %v1517, %v1573
      %vm1575 = vcmp.eq.f32.partialorder %v1517, inf
      %v1576 = vsel %vm1575, %v1517, %v1574
      %vm1577 = vcmp.eq.f32.partialorder %v1517, 0.0
      %v1578 = vand.u32 %v1517, 2147483648
      %v1579 = vsel %vm1577, %v1578, %v1576
      %v1580 = vrsqrt.pop %v1519
      %v1581 = vmul.f32 %v1519, %v1580
      %vm1582 = vcmp.eq.f32.partialorder %v1519, inf
      %v1583 = vsel %vm1582, %v1519, %v1581
      %vm1584 = vcmp.eq.f32.partialorder %v1519, 0.0
      %v1585 = vand.u32 %v1519, 2147483648
      %v1586 = vsel %vm1584, %v1585, %v1583
      %v1587 = vrsqrt.pop %v1521
      %v1588 = vmul.f32 %v1521, %v1587
      %vm1589 = vcmp.eq.f32.partialorder %v1521, inf
      %v1590 = vsel %vm1589, %v1521, %v1588
      %vm1591 = vcmp.eq.f32.partialorder %v1521, 0.0
      %v1592 = vand.u32 %v1521, 2147483648
      %v1593 = vsel %vm1591, %v1592, %v1590
      %v1594 = vrsqrt.pop %v1523
      %v1595 = vmul.f32 %v1523, %v1594
      %vm1596 = vcmp.eq.f32.partialorder %v1523, inf
      %v1597 = vsel %vm1596, %v1523, %v1595
      %vm1598 = vcmp.eq.f32.partialorder %v1523, 0.0
      %v1599 = vand.u32 %v1523, 2147483648
      %v1600 = vsel %vm1598, %v1599, %v1597
      %v1601 = vrsqrt.pop %v1525
      %v1602 = vmul.f32 %v1525, %v1601
      %vm1603 = vcmp.eq.f32.partialorder %v1525, inf
      %v1604 = vsel %vm1603, %v1525, %v1602
      %vm1605 = vcmp.eq.f32.partialorder %v1525, 0.0
      %v1606 = vand.u32 %v1525, 2147483648
      %v1607 = vsel %vm1605, %v1606, %v1604
      %v1608 = vrsqrt.pop %v1527
      %v1609 = vmul.f32 %v1527, %v1608
      %vm1610 = vcmp.eq.f32.partialorder %v1527, inf
      %v1611 = vsel %vm1610, %v1527, %v1609
      %vm1612 = vcmp.eq.f32.partialorder %v1527, 0.0
      %v1613 = vand.u32 %v1527, 2147483648
      %v1614 = vsel %vm1612, %v1613, %v1611
      %v1615 = vrsqrt.pop %v1529
      %v1616 = vmul.f32 %v1529, %v1615
      %vm1617 = vcmp.eq.f32.partialorder %v1529, inf
      %v1618 = vsel %vm1617, %v1529, %v1616
      %vm1619 = vcmp.eq.f32.partialorder %v1529, 0.0
      %v1620 = vand.u32 %v1529, 2147483648
      %v1621 = vsel %vm1619, %v1620, %v1618
      %v1622 = vrsqrt.pop %v1531
      %v1623 = vmul.f32 %v1531, %v1622
      %vm1624 = vcmp.eq.f32.partialorder %v1531, inf
      %v1625 = vsel %vm1624, %v1531, %v1623
      %vm1626 = vcmp.eq.f32.partialorder %v1531, 0.0
      %v1627 = vand.u32 %v1531, 2147483648
      %v1628 = vsel %vm1626, %v1627, %v1625
      %v1629 = vrsqrt.pop %v1533
      %v1630 = vmul.f32 %v1533, %v1629
      %vm1631 = vcmp.eq.f32.partialorder %v1533, inf
      %v1632 = vsel %vm1631, %v1533, %v1630
      %vm1633 = vcmp.eq.f32.partialorder %v1533, 0.0
      %v1634 = vand.u32 %v1533, 2147483648
      %v1635 = vsel %vm1633, %v1634, %v1632
      %v1636 = vrsqrt.pop %v1535
      %v1637 = vmul.f32 %v1535, %v1636
      %vm1638 = vcmp.eq.f32.partialorder %v1535, inf
      %v1639 = vsel %vm1638, %v1535, %v1637
      %vm1640 = vcmp.eq.f32.partialorder %v1535, 0.0
      %v1641 = vand.u32 %v1535, 2147483648
      %v1642 = vsel %vm1640, %v1641, %v1639
      %v1643 = vrsqrt.pop %v1537
      %v1644 = vmul.f32 %v1537, %v1643
      %vm1645 = vcmp.eq.f32.partialorder %v1537, inf
      %v1646 = vsel %vm1645, %v1537, %v1644
      %vm1647 = vcmp.eq.f32.partialorder %v1537, 0.0
      %v1648 = vand.u32 %v1537, 2147483648
      %v1649 = vsel %vm1647, %v1648, %v1646
      %v1650 = vmax.f32 %v1544, 1e-08
      %v1651 = vmax.f32 %v1551, 1e-08
      %v1652 = vmax.f32 %v1558, 1e-08
      %v1653 = vmax.f32 %v1565, 1e-08
      %v1654 = vmax.f32 %v1572, 1e-08
      %v1655 = vmax.f32 %v1579, 1e-08
      %v1656 = vmax.f32 %v1586, 1e-08
      %v1657 = vmax.f32 %v1593, 1e-08
      %v1658 = vmax.f32 %v1600, 1e-08
      %v1659 = vmax.f32 %v1607, 1e-08
      %v1660 = vmax.f32 %v1614, 1e-08
      %v1661 = vmax.f32 %v1621, 1e-08
      %v1662 = vmax.f32 %v1628, 1e-08
      %v1663 = vmax.f32 %v1635, 1e-08
      %v1664 = vmax.f32 %v1642, 1e-08
      %v1665 = vmax.f32 %v1649, 1e-08
      %v1666 = vmul.f32 %v1235, %v1650
      %v1667 = vmul.f32 %v1237, %v1651
      %v1668 = vmul.f32 %v1239, %v1652
      %v1669 = vmul.f32 %v1241, %v1653
      %v1670 = vmul.f32 %v1243, %v1654
      %v1671 = vmul.f32 %v1245, %v1655
      %v1672 = vmul.f32 %v1247, %v1656
      %v1673 = vmul.f32 %v1249, %v1657
      %v1674 = vmul.f32 %v1251, %v1658
      %v1675 = vmul.f32 %v1253, %v1659
      %v1676 = vmul.f32 %v1255, %v1660
      %v1677 = vmul.f32 %v1257, %v1661
      %v1678 = vmul.f32 %v1259, %v1662
      %v1679 = vmul.f32 %v1261, %v1663
      %v1680 = vmul.f32 %v1263, %v1664
      %v1681 = vmul.f32 %v1265, %v1665
      %v1682 = vmul.f32 %v1283, %v1474
      %v1683 = vmul.f32 %v1285, %v1475
      %v1684 = vmul.f32 %v1287, %v1476
      %v1685 = vmul.f32 %v1289, %v1477
      %v1686 = vmul.f32 %v1291, %v1478
      %v1687 = vmul.f32 %v1293, %v1479
      %v1688 = vmul.f32 %v1295, %v1480
      %v1689 = vmul.f32 %v1297, %v1481
      %v1690 = vmul.f32 %v1299, %v1482
      %v1691 = vmul.f32 %v1301, %v1483
      %v1692 = vmul.f32 %v1303, %v1484
      %v1693 = vmul.f32 %v1305, %v1485
      %v1694 = vmul.f32 %v1307, %v1486
      %v1695 = vmul.f32 %v1309, %v1487
      %v1696 = vmul.f32 %v1311, %v1488
      %v1697 = vmul.f32 %v1313, %v1489
      %vm1698 = vcmp.gt.f32.partialorder %v1666, %v1682
      %vm1699 = vcmp.gt.f32.partialorder %v1667, %v1683
      %vm1700 = vcmp.gt.f32.partialorder %v1668, %v1684
      %vm1701 = vcmp.gt.f32.partialorder %v1669, %v1685
      %vm1702 = vcmp.gt.f32.partialorder %v1670, %v1686
      %vm1703 = vcmp.gt.f32.partialorder %v1671, %v1687
      %vm1704 = vcmp.gt.f32.partialorder %v1672, %v1688
      %vm1705 = vcmp.gt.f32.partialorder %v1673, %v1689
      %vm1706 = vcmp.gt.f32.partialorder %v1674, %v1690
      %vm1707 = vcmp.gt.f32.partialorder %v1675, %v1691
      %vm1708 = vcmp.gt.f32.partialorder %v1676, %v1692
      %vm1709 = vcmp.gt.f32.partialorder %v1677, %v1693
      %vm1710 = vcmp.gt.f32.partialorder %v1678, %v1694
      %vm1711 = vcmp.gt.f32.partialorder %v1679, %v1695
      %vm1712 = vcmp.gt.f32.partialorder %v1680, %v1696
      %vm1713 = vcmp.gt.f32.partialorder %v1681, %v1697
      %v1714 = vsel %vm1698, 1, 0
      %v1715 = vsel %vm1699, 1, 0
      %v1716 = vsel %vm1700, 1, 0
      %v1717 = vsel %vm1701, 1, 0
      %v1718 = vsel %vm1702, 1, 0
      %v1719 = vsel %vm1703, 1, 0
      %v1720 = vsel %vm1704, 1, 0
      %v1721 = vsel %vm1705, 1, 0
      %v1722 = vsel %vm1706, 1, 0
      %v1723 = vsel %vm1707, 1, 0
      %v1724 = vsel %vm1708, 1, 0
      %v1725 = vsel %vm1709, 1, 0
      %v1726 = vsel %vm1710, 1, 0
      %v1727 = vsel %vm1711, 1, 0
      %v1728 = vsel %vm1712, 1, 0
      %v1729 = vsel %vm1713, 1, 0
      %v1730 = vcvt.s32.f32 %v1714
      %v1731 = vcvt.s32.f32 %v1715
      %v1732 = vcvt.s32.f32 %v1716
      %v1733 = vcvt.s32.f32 %v1717
      %v1734 = vcvt.s32.f32 %v1718
      %v1735 = vcvt.s32.f32 %v1719
      %v1736 = vcvt.s32.f32 %v1720
      %v1737 = vcvt.s32.f32 %v1721
      %v1738 = vcvt.s32.f32 %v1722
      %v1739 = vcvt.s32.f32 %v1723
      %v1740 = vcvt.s32.f32 %v1724
      %v1741 = vcvt.s32.f32 %v1725
      %v1742 = vcvt.s32.f32 %v1726
      %v1743 = vcvt.s32.f32 %v1727
      %v1744 = vcvt.s32.f32 %v1728
      %v1745 = vcvt.s32.f32 %v1729
      %1746 = vst [vmem:[#allocation9] sm:$0xff] %v1730
      %1747 = vst [vmem:[#allocation9 + $0x8] sm:$0xff] %v1731
      %1748 = vst [vmem:[#allocation9 + $0x10] sm:$0xff] %v1732
      %1749 = vst [vmem:[#allocation9 + $0x18] sm:$0xff] %v1733
      %1750 = vst [vmem:[#allocation9 + $0x20] sm:$0xff] %v1734
      %1751 = vst [vmem:[#allocation9 + $0x28] sm:$0xff] %v1735
      %1752 = vst [vmem:[#allocation9 + $0x30] sm:$0xff] %v1736
      %1753 = vst [vmem:[#allocation9 + $0x38] sm:$0xff] %v1737
      %1754 = vst [vmem:[#allocation9 + $0x40] sm:$0xff] %v1738
      %1755 = vst [vmem:[#allocation9 + $0x48] sm:$0xff] %v1739
      %1756 = vst [vmem:[#allocation9 + $0x50] sm:$0xff] %v1740
      %1757 = vst [vmem:[#allocation9 + $0x58] sm:$0xff] %v1741
      %1758 = vst [vmem:[#allocation9 + $0x60] sm:$0xff] %v1742
      %1759 = vst [vmem:[#allocation9 + $0x68] sm:$0xff] %v1743
      %1760 = vst [vmem:[#allocation9 + $0x70] sm:$0xff] %v1744
      %1761 = vst [vmem:[#allocation9 + $0x78] sm:$0xff] %v1745
    $region33: #{tpu_custom_call.1} parent=1 // pred_fallthru
      _
    // Predicated region
    $region34: #{tpu_custom_call.1} parent=1 // pred_check
      _
    $region35: #{tpu_custom_call.1} parent=1 // pred_check_branch
      %1763 = sbr.rel (0) target = $region37
    $region36: #{tpu_custom_call.1} parent=1 // pred_region
      %s1765 = ssub.s32 2048, 2048
      %1766 = vsyncadd [#allocation5], %s1765
      %s1767 = sshll.u32 [#allocation9], 4
      %s1768 = int_to_ptr.vmem [resolvable:$true] %s1767
      %1773 = dma.vmem_to_hbm [thread:$0]  %s1768, 2048, %s3, [#allocation5], 128, 128, 8
    $region37: #{tpu_custom_call.1} parent=1 // pred_fallthru
      _
    // Predicated region
    $region38: #{tpu_custom_call.1} parent=1 // pred_check
      _
    $region39: #{tpu_custom_call.1} parent=1 // pred_check_branch
      %1775 = sbr.rel (0) target = $region41
    $region40: #{tpu_custom_call.1} parent=1 // pred_region
      %1776 = dma.done [#allocation5], 2048
    $region41: #{tpu_custom_call.1} parent=1 // pred_fallthru
      _
    %1777 = vsyncpa [#allocation4], 1
    %1778 = vsyncpa [#allocation7], 1
    %1779 = vsyncpa [#allocation5], 1

</llo_original>
